<compile_context>
chip_gen: v5e
topology: v5e:2x2
jax: 0.10.0
libtpu: 0.0.40
codegen_flags: <defaults>
</compile_context>

<pallas_src>
import jax
import jax.numpy as jnp
from jax import lax
from jax.experimental import pallas as pl
from jax.experimental.pallas import tpu as pltpu

EPS = 1e-6
DW_K = 7  # bigkernel=True -> depthwise kernel_size=7, padding=3


def _ln(x, g, b):
    """LayerNorm over the last (channel) axis: (x - mu) / sqrt(var + eps) * g + b."""
    mu = jnp.mean(x, axis=-1, keepdims=True)
    var = jnp.mean(jnp.square(x - mu), axis=-1, keepdims=True)
    return (x - mu) * lax.rsqrt(var + EPS) * g + b


def _dwconv(x, w, b, pad_ref):
    """Depthwise Conv1d (kernel=7, zero padding=3) along the sublane (L) axis.

    Uses a zero-padded VMEM scratch of shape (L + 6, C) and 7 static slices
    (no XLU rolls, no iota/compare/select edge masking).
    """
    L = x.shape[0]
    pad_ref[...] = jnp.zeros(pad_ref.shape, jnp.float32)
    pad_ref[DW_K // 2:DW_K // 2 + L, :] = x
    acc = pad_ref[0:L, :] * w[0:1, :]
    for k in range(1, DW_K):
        acc = acc + pad_ref[k:k + L, :] * w[k:k + 1, :]
    return acc + b


# --------------------------- fused forward builder ---------------------------

def make_convnext_forward(params, B, L, in_chans, num_classes):
    """Builds a single fused pallas_call implementing the whole forward pass."""
    dims = params["dims"]
    depths = [len(s) for s in params["stages"]]
    n_stages = len(dims)
    stage_L = [L // (2 ** i) for i in range(n_stages)]

    # ---- flatten all weights (plus the tiny even/odd selection matrices) ----
    flat = [params["stem"][k] for k in ("w", "b", "g", "be")]
    for i in range(n_stages):
        if i > 0:
            ds = params["downsample"][i - 1]
            Lc, Lh = stage_L[i - 1], stage_L[i]
            r = jnp.arange(Lh, dtype=jnp.int32)[:, None]
            c = jnp.arange(Lc, dtype=jnp.int32)[None, :]
            se = (c == 2 * r).astype(jnp.float32)       # picks even rows
            so = (c == 2 * r + 1).astype(jnp.float32)   # picks odd rows
            flat += [ds["g"], ds["be"], se, so, ds["w0t"], ds["w1t"], ds["b"]]
        for blk in params["stages"][i]:
            flat += [blk[k] for k in ("dw_w", "dw_b", "ln_g", "ln_b",
                                      "w1", "b1", "w2", "b2", "gamma")]
    flat += [params["head"][k] for k in ("g", "be", "wfc", "bfc")]

    n_in = 1 + len(flat)  # x + all weights

    def kernel(*refs):
        x_ref = refs[0]
        o_ref = refs[n_in]
        pad_refs = refs[n_in + 1:]
        w_it = iter(refs[1:n_in])
        nxt = lambda: next(w_it)[...]

        # ---- stem: Conv1d(k=1) == channel matmul, then channels-first LN ----
        # (K = in_chans = 4 is tiny; within this fused kernel the MXU has huge
        #  slack so a single small dot is fine and keeps lowering simple.)
        w_s, b_s, g_s, be_s = nxt(), nxt(), nxt(), nxt()
        x = x_ref[0]                                         # (L, in_chans)
        y = jnp.dot(x, w_s, preferred_element_type=jnp.float32) + b_s
        y = _ln(y, g_s, be_s)

        for i in range(n_stages):
            if i > 0:
                # downsample: channels-first LN then Conv1d(k=2, s=2)
                g_d, be_d, se, so, w0t, w1t, b_d = (
                    nxt(), nxt(), nxt(), nxt(), nxt(), nxt(), nxt())
                yn = _ln(y, g_d, be_d)
                even = jnp.dot(se, yn, preferred_element_type=jnp.float32)
                odd = jnp.dot(so, yn, preferred_element_type=jnp.float32)
                y = (jnp.dot(even, w0t, preferred_element_type=jnp.float32)
                     + jnp.dot(odd, w1t, preferred_element_type=jnp.float32)
                     + b_d)

            for _ in range(depths[i]):
                dw_w, dw_b, g_b, be_b, w1, b1, w2, b2, gamma = (
                    nxt(), nxt(), nxt(), nxt(), nxt(), nxt(), nxt(), nxt(), nxt())
                conv = _dwconv(y, dw_w, dw_b, pad_refs[i])
                h = _ln(conv, g_b, be_b)
                h = jnp.dot(h, w1, preferred_element_type=jnp.float32) + b1
                # TODO(synk): PyTorch nn.GELU() is the exact erf GELU; tanh
                # approximation used for guaranteed Mosaic lowering (~1e-3 dev).
                h = jax.nn.gelu(h, approximate=True)
                h = jnp.dot(h, w2, preferred_element_type=jnp.float32) + b2
                y = y + h * gamma                     # drop_path_rate = 0 -> identity

        # ---- head: mean over sequence, LayerNorm, Linear ----
        g_h, be_h, wfc, bfc = nxt(), nxt(), nxt(), nxt()
        m = jnp.mean(y, axis=0, keepdims=True)                 # (1, C_last)
        m = _ln(m, g_h, be_h)
        o_ref[0] = jnp.dot(m, wfc, preferred_element_type=jnp.float32) + bfc

    def _full_spec(arr):
        nd = arr.ndim
        return pl.BlockSpec(arr.shape, lambda b, _nd=nd: (0,) * _nd)

    in_specs = [pl.BlockSpec((1, L, in_chans), lambda b: (b, 0, 0))]
    in_specs += [_full_spec(w) for w in flat]

    scratch_shapes = [pltpu.VMEM((stage_L[i] + DW_K - 1, dims[i]), jnp.float32)
                      for i in range(n_stages)]

    fused = pl.pallas_call(
        kernel,
        out_shape=jax.ShapeDtypeStruct((B, 1, num_classes), jnp.float32),
        grid=(B,),
        in_specs=in_specs,
        out_specs=pl.BlockSpec((1, 1, num_classes), lambda b: (b, 0, 0)),
        scratch_shapes=scratch_shapes,
        compiler_params=pltpu.CompilerParams(dimension_semantics=("parallel",)),
    )

    def forward(x):
        out = fused(x.astype(jnp.float32), *flat)
        return out.reshape(B, num_classes)

    return forward


# --------------------------- parameters --------------------------------------

def trunc_normal(key, shape, std=0.02):
    return std * jax.random.truncated_normal(key, -2.0, 2.0, shape, jnp.float32)


def init_params(key, in_chans, dims, depths, num_classes, layer_scale_init_value=1e-6):
    keys = iter(jax.random.split(key, 64))
    tn = lambda shape: trunc_normal(next(keys), shape)
    p = {"dims": list(dims)}

    # stem: Conv1d(in_chans, dims[0], k=1) + LayerNorm(channels_first)
    w_stem = tn((dims[0], in_chans, 1))                        # torch (Cout, Cin, 1)
    p["stem"] = dict(
        w=jnp.transpose(w_stem[:, :, 0]),                      # (Cin, Cout)
        b=jnp.zeros((1, dims[0]), jnp.float32),
        g=jnp.ones((1, dims[0]), jnp.float32),
        be=jnp.zeros((1, dims[0]), jnp.float32),
    )

    # downsample layers: LayerNorm(channels_first) + Conv1d(k=2, s=2)
    p["downsample"] = []
    for i in range(1, len(dims)):
        w = tn((dims[i], dims[i - 1], 2))                      # torch (Cout, Cin, 2)
        p["downsample"].append(dict(
            g=jnp.ones((1, dims[i - 1]), jnp.float32),
            be=jnp.zeros((1, dims[i - 1]), jnp.float32),
            w0t=jnp.transpose(w[:, :, 0]),                     # (Cin, Cout), tap 0
            w1t=jnp.transpose(w[:, :, 1]),                     # (Cin, Cout), tap 1
            b=jnp.zeros((1, dims[i]), jnp.float32),
        ))

    # stages of ConvNeXt blocks
    p["stages"] = []
    for i, d in enumerate(dims):
        blocks = []
        for _ in range(depths[i]):
            dw = tn((d, 1, DW_K))                              # depthwise Conv1d weight
            w1 = tn((4 * d, d))                                # Linear(d, 4d).weight
            w2 = tn((d, 4 * d))                                # Linear(4d, d).weight
            blocks.append(dict(
                dw_w=jnp.transpose(dw[:, 0, :]),               # (7, d)
                dw_b=jnp.zeros((1, d), jnp.float32),
                ln_g=jnp.ones((1, d), jnp.float32),
                ln_b=jnp.zeros((1, d), jnp.float32),
                w1=jnp.transpose(w1),                          # (d, 4d)
                b1=jnp.zeros((1, 4 * d), jnp.float32),
                w2=jnp.transpose(w2),                          # (4d, d)
                b2=jnp.zeros((1, d), jnp.float32),
                gamma=jnp.full((1, d), layer_scale_init_value, jnp.float32),
            ))
        p["stages"].append(blocks)

    # head: LayerNorm(channels_last) + Linear(dims[-1], num_classes), head_init_scale=1
    wfc = tn((num_classes, dims[-1]))
    p["head"] = dict(
        g=jnp.ones((1, dims[-1]), jnp.float32),
        be=jnp.zeros((1, dims[-1]), jnp.float32),
        wfc=jnp.transpose(wfc),                                # (dims[-1], num_classes)
        bfc=jnp.zeros((1, num_classes), jnp.float32),
    )
    return p


if __name__ == "__main__":
    B, L = 2, 16
    IN_CHANS = 4
    DIMS = [16, 32]       # unet_layers = 2
    DEPTHS = [1, 1]
    NUM_CLASSES = 10

    key = jax.random.PRNGKey(0)
    kx, kp = jax.random.split(key)
    x = jax.random.normal(kx, (B, L, IN_CHANS), jnp.float32)
    params = init_params(kp, IN_CHANS, DIMS, DEPTHS, NUM_CLASSES)

    forward = make_convnext_forward(params, B, L, IN_CHANS, NUM_CLASSES)
    out = jax.block_until_ready(forward(x))
    assert out.shape == (B, NUM_CLASSES), out.shape
    print("KERNEL_OK")
</pallas_src>

<mosaic_0001>
module attributes {stable_mosaic.version = 11 : i64} {
  func.func @kernel(%arg0: i32, %arg1: memref<1x16x4xf32, #tpu.memory_space<vmem>>, %arg2: memref<4x16xf32, #tpu.memory_space<vmem>>, %arg3: memref<1x16xf32, #tpu.memory_space<vmem>>, %arg4: memref<1x16xf32, #tpu.memory_space<vmem>>, %arg5: memref<1x16xf32, #tpu.memory_space<vmem>>, %arg6: memref<7x16xf32, #tpu.memory_space<vmem>>, %arg7: memref<1x16xf32, #tpu.memory_space<vmem>>, %arg8: memref<1x16xf32, #tpu.memory_space<vmem>>, %arg9: memref<1x16xf32, #tpu.memory_space<vmem>>, %arg10: memref<16x64xf32, #tpu.memory_space<vmem>>, %arg11: memref<1x64xf32, #tpu.memory_space<vmem>>, %arg12: memref<64x16xf32, #tpu.memory_space<vmem>>, %arg13: memref<1x16xf32, #tpu.memory_space<vmem>>, %arg14: memref<1x16xf32, #tpu.memory_space<vmem>>, %arg15: memref<1x16xf32, #tpu.memory_space<vmem>>, %arg16: memref<1x16xf32, #tpu.memory_space<vmem>>, %arg17: memref<8x16xf32, #tpu.memory_space<vmem>>, %arg18: memref<8x16xf32, #tpu.memory_space<vmem>>, %arg19: memref<16x32xf32, #tpu.memory_space<vmem>>, %arg20: memref<16x32xf32, #tpu.memory_space<vmem>>, %arg21: memref<1x32xf32, #tpu.memory_space<vmem>>, %arg22: memref<7x32xf32, #tpu.memory_space<vmem>>, %arg23: memref<1x32xf32, #tpu.memory_space<vmem>>, %arg24: memref<1x32xf32, #tpu.memory_space<vmem>>, %arg25: memref<1x32xf32, #tpu.memory_space<vmem>>, %arg26: memref<32x128xf32, #tpu.memory_space<vmem>>, %arg27: memref<1x128xf32, #tpu.memory_space<vmem>>, %arg28: memref<128x32xf32, #tpu.memory_space<vmem>>, %arg29: memref<1x32xf32, #tpu.memory_space<vmem>>, %arg30: memref<1x32xf32, #tpu.memory_space<vmem>>, %arg31: memref<1x32xf32, #tpu.memory_space<vmem>>, %arg32: memref<1x32xf32, #tpu.memory_space<vmem>>, %arg33: memref<32x10xf32, #tpu.memory_space<vmem>>, %arg34: memref<1x10xf32, #tpu.memory_space<vmem>>, %arg35: memref<1x1x10xf32, #tpu.memory_space<vmem>>, %arg36: memref<22x16xf32, #tpu.memory_space<vmem>>, %arg37: memref<14x32xf32, #tpu.memory_space<vmem>>) attributes {dimension_semantics = [#tpu.dimension_semantics<parallel>], iteration_bounds = array<i64: 2>, scalar_prefetch = 0 : i64, scratch_operands = 2 : i64, tpu.core_type = #tpu.core_type<tc>, window_params = [{transform_indices = @transform_0, window_bounds = array<i64: 1, 16, 4>}, {pipeline_mode = #tpu.pipeline_mode<synchronous>, transform_indices = @transform_1, window_bounds = array<i64: 4, 16>}, {pipeline_mode = #tpu.pipeline_mode<synchronous>, transform_indices = @transform_2, window_bounds = array<i64: 1, 16>}, {pipeline_mode = #tpu.pipeline_mode<synchronous>, transform_indices = @transform_3, window_bounds = array<i64: 1, 16>}, {pipeline_mode = #tpu.pipeline_mode<synchronous>, transform_indices = @transform_4, window_bounds = array<i64: 1, 16>}, {pipeline_mode = #tpu.pipeline_mode<synchronous>, transform_indices = @transform_5, window_bounds = array<i64: 7, 16>}, {pipeline_mode = #tpu.pipeline_mode<synchronous>, transform_indices = @transform_6, window_bounds = array<i64: 1, 16>}, {pipeline_mode = #tpu.pipeline_mode<synchronous>, transform_indices = @transform_7, window_bounds = array<i64: 1, 16>}, {pipeline_mode = #tpu.pipeline_mode<synchronous>, transform_indices = @transform_8, window_bounds = array<i64: 1, 16>}, {pipeline_mode = #tpu.pipeline_mode<synchronous>, transform_indices = @transform_9, window_bounds = array<i64: 16, 64>}, {pipeline_mode = #tpu.pipeline_mode<synchronous>, transform_indices = @transform_10, window_bounds = array<i64: 1, 64>}, {pipeline_mode = #tpu.pipeline_mode<synchronous>, transform_indices = @transform_11, window_bounds = array<i64: 64, 16>}, {pipeline_mode = #tpu.pipeline_mode<synchronous>, transform_indices = @transform_12, window_bounds = array<i64: 1, 16>}, {pipeline_mode = #tpu.pipeline_mode<synchronous>, transform_indices = @transform_13, window_bounds = array<i64: 1, 16>}, {pipeline_mode = #tpu.pipeline_mode<synchronous>, transform_indices = @transform_14, window_bounds = array<i64: 1, 16>}, {pipeline_mode = #tpu.pipeline_mode<synchronous>, transform_indices = @transform_15, window_bounds = array<i64: 1, 16>}, {pipeline_mode = #tpu.pipeline_mode<synchronous>, transform_indices = @transform_16, window_bounds = array<i64: 8, 16>}, {pipeline_mode = #tpu.pipeline_mode<synchronous>, transform_indices = @transform_17, window_bounds = array<i64: 8, 16>}, {pipeline_mode = #tpu.pipeline_mode<synchronous>, transform_indices = @transform_18, window_bounds = array<i64: 16, 32>}, {pipeline_mode = #tpu.pipeline_mode<synchronous>, transform_indices = @transform_19, window_bounds = array<i64: 16, 32>}, {pipeline_mode = #tpu.pipeline_mode<synchronous>, transform_indices = @transform_20, window_bounds = array<i64: 1, 32>}, {pipeline_mode = #tpu.pipeline_mode<synchronous>, transform_indices = @transform_21, window_bounds = array<i64: 7, 32>}, {pipeline_mode = #tpu.pipeline_mode<synchronous>, transform_indices = @transform_22, window_bounds = array<i64: 1, 32>}, {pipeline_mode = #tpu.pipeline_mode<synchronous>, transform_indices = @transform_23, window_bounds = array<i64: 1, 32>}, {pipeline_mode = #tpu.pipeline_mode<synchronous>, transform_indices = @transform_24, window_bounds = array<i64: 1, 32>}, {pipeline_mode = #tpu.pipeline_mode<synchronous>, transform_indices = @transform_25, window_bounds = array<i64: 32, 128>}, {pipeline_mode = #tpu.pipeline_mode<synchronous>, transform_indices = @transform_26, window_bounds = array<i64: 1, 128>}, {pipeline_mode = #tpu.pipeline_mode<synchronous>, transform_indices = @transform_27, window_bounds = array<i64: 128, 32>}, {pipeline_mode = #tpu.pipeline_mode<synchronous>, transform_indices = @transform_28, window_bounds = array<i64: 1, 32>}, {pipeline_mode = #tpu.pipeline_mode<synchronous>, transform_indices = @transform_29, window_bounds = array<i64: 1, 32>}, {pipeline_mode = #tpu.pipeline_mode<synchronous>, transform_indices = @transform_30, window_bounds = array<i64: 1, 32>}, {pipeline_mode = #tpu.pipeline_mode<synchronous>, transform_indices = @transform_31, window_bounds = array<i64: 1, 32>}, {pipeline_mode = #tpu.pipeline_mode<synchronous>, transform_indices = @transform_32, window_bounds = array<i64: 32, 10>}, {pipeline_mode = #tpu.pipeline_mode<synchronous>, transform_indices = @transform_33, window_bounds = array<i64: 1, 10>}, {transform_indices = @transform_34, window_bounds = array<i64: 1, 1, 10>}]} {
    %c0 = arith.constant 0 : index
    %c0_0 = arith.constant 0 : index
    %0 = vector.load %arg2[%c0, %c0_0] : memref<4x16xf32, #tpu.memory_space<vmem>>, vector<4x16xf32>
    %c0_1 = arith.constant 0 : index
    %c0_2 = arith.constant 0 : index
    %1 = vector.load %arg3[%c0_1, %c0_2] : memref<1x16xf32, #tpu.memory_space<vmem>>, vector<1x16xf32>
    %c0_3 = arith.constant 0 : index
    %c0_4 = arith.constant 0 : index
    %2 = vector.load %arg4[%c0_3, %c0_4] : memref<1x16xf32, #tpu.memory_space<vmem>>, vector<1x16xf32>
    %c0_5 = arith.constant 0 : index
    %c0_6 = arith.constant 0 : index
    %3 = vector.load %arg5[%c0_5, %c0_6] : memref<1x16xf32, #tpu.memory_space<vmem>>, vector<1x16xf32>
    %c0_7 = arith.constant 0 : index
    %c0_8 = arith.constant 0 : index
    %c0_9 = arith.constant 0 : index
    %4 = vector.load %arg1[%c0_7, %c0_8, %c0_9] : memref<1x16x4xf32, #tpu.memory_space<vmem>>, vector<1x16x4xf32>
    %5 = vector.shape_cast %4 : vector<1x16x4xf32> to vector<16x4xf32>
    %cst = arith.constant dense<0.000000e+00> : vector<16x16xf32>
    %6 = tpu.matmul %5, %0, %cst {dimension_numbers = #tpu.dot_dimension_numbers<[1], [0], [0], [1], [0, 0, 1, 1], [], []>} : vector<16x4xf32>, vector<4x16xf32>, vector<16x16xf32> -> vector<16x16xf32>
    %7 = vector.broadcast %1 : vector<1x16xf32> to vector<16x16xf32>
    %8 = arith.addf %6, %7 : vector<16x16xf32>
    %cst_10 = arith.constant dense<0.000000e+00> : vector<16xf32>
    %9 = vector.multi_reduction <add>, %8, %cst_10 [1] : vector<16x16xf32> to vector<16xf32>
    %10 = vector.shape_cast %9 : vector<16xf32> to vector<16x1xf32>
    %cst_11 = arith.constant 1.600000e+01 : f32
    %11 = vector.broadcast %cst_11 : f32 to vector<16x1xf32>
    %12 = arith.divf %10, %11 : vector<16x1xf32>
    %13 = vector.broadcast %12 : vector<16x1xf32> to vector<16x16xf32>
    %14 = arith.subf %8, %13 : vector<16x16xf32>
    %15 = arith.mulf %14, %14 : vector<16x16xf32>
    %cst_12 = arith.constant dense<0.000000e+00> : vector<16xf32>
    %16 = vector.multi_reduction <add>, %15, %cst_12 [1] : vector<16x16xf32> to vector<16xf32>
    %17 = vector.shape_cast %16 : vector<16xf32> to vector<16x1xf32>
    %cst_13 = arith.constant 1.600000e+01 : f32
    %18 = vector.broadcast %cst_13 : f32 to vector<16x1xf32>
    %19 = arith.divf %17, %18 : vector<16x1xf32>
    %20 = vector.broadcast %12 : vector<16x1xf32> to vector<16x16xf32>
    %21 = arith.subf %8, %20 : vector<16x16xf32>
    %cst_14 = arith.constant 9.99999997E-7 : f32
    %22 = vector.broadcast %cst_14 : f32 to vector<16x1xf32>
    %23 = arith.addf %19, %22 : vector<16x1xf32>
    %24 = math.rsqrt %23 : vector<16x1xf32>
    %25 = vector.broadcast %24 : vector<16x1xf32> to vector<16x16xf32>
    %26 = arith.mulf %21, %25 : vector<16x16xf32>
    %27 = vector.broadcast %2 : vector<1x16xf32> to vector<16x16xf32>
    %28 = arith.mulf %26, %27 : vector<16x16xf32>
    %29 = vector.broadcast %3 : vector<1x16xf32> to vector<16x16xf32>
    %30 = arith.addf %28, %29 : vector<16x16xf32>
    %c0_15 = arith.constant 0 : index
    %c0_16 = arith.constant 0 : index
    %31 = vector.load %arg6[%c0_15, %c0_16] : memref<7x16xf32, #tpu.memory_space<vmem>>, vector<7x16xf32>
    %c0_17 = arith.constant 0 : index
    %c0_18 = arith.constant 0 : index
    %32 = vector.load %arg7[%c0_17, %c0_18] : memref<1x16xf32, #tpu.memory_space<vmem>>, vector<1x16xf32>
    %c0_19 = arith.constant 0 : index
    %c0_20 = arith.constant 0 : index
    %33 = vector.load %arg8[%c0_19, %c0_20] : memref<1x16xf32, #tpu.memory_space<vmem>>, vector<1x16xf32>
    %c0_21 = arith.constant 0 : index
    %c0_22 = arith.constant 0 : index
    %34 = vector.load %arg9[%c0_21, %c0_22] : memref<1x16xf32, #tpu.memory_space<vmem>>, vector<1x16xf32>
    %c0_23 = arith.constant 0 : index
    %c0_24 = arith.constant 0 : index
    %35 = vector.load %arg10[%c0_23, %c0_24] : memref<16x64xf32, #tpu.memory_space<vmem>>, vector<16x64xf32>
    %c0_25 = arith.constant 0 : index
    %c0_26 = arith.constant 0 : index
    %36 = vector.load %arg11[%c0_25, %c0_26] : memref<1x64xf32, #tpu.memory_space<vmem>>, vector<1x64xf32>
    %c0_27 = arith.constant 0 : index
    %c0_28 = arith.constant 0 : index
    %37 = vector.load %arg12[%c0_27, %c0_28] : memref<64x16xf32, #tpu.memory_space<vmem>>, vector<64x16xf32>
    %c0_29 = arith.constant 0 : index
    %c0_30 = arith.constant 0 : index
    %38 = vector.load %arg13[%c0_29, %c0_30] : memref<1x16xf32, #tpu.memory_space<vmem>>, vector<1x16xf32>
    %c0_31 = arith.constant 0 : index
    %c0_32 = arith.constant 0 : index
    %39 = vector.load %arg14[%c0_31, %c0_32] : memref<1x16xf32, #tpu.memory_space<vmem>>, vector<1x16xf32>
    %cst_33 = arith.constant 0.000000e+00 : f32
    %40 = vector.broadcast %cst_33 : f32 to vector<22x16xf32>
    %c0_34 = arith.constant 0 : index
    %c0_35 = arith.constant 0 : index
    %41 = vector.load %arg36[%c0_34, %c0_35] : memref<22x16xf32, #tpu.memory_space<vmem>>, vector<22x16xf32>
    tpu.vector_store %arg36[%c0_34, %c0_35], %40 {strides = array<i32>} : memref<22x16xf32, #tpu.memory_space<vmem>>, vector<22x16xf32>,
    %c3 = arith.constant 3 : index
    %c0_36 = arith.constant 0 : index
    %42 = vector.load %arg36[%c3, %c0_36] : memref<22x16xf32, #tpu.memory_space<vmem>>, vector<16x16xf32>
    tpu.vector_store %arg36[%c3, %c0_36], %30 {strides = array<i32>} : memref<22x16xf32, #tpu.memory_space<vmem>>, vector<16x16xf32>,
    %c0_37 = arith.constant 0 : index
    %c0_38 = arith.constant 0 : index
    %43 = vector.load %arg36[%c0_37, %c0_38] : memref<22x16xf32, #tpu.memory_space<vmem>>, vector<16x16xf32>
    %44 = vector.extract_strided_slice %31 {offsets = [0, 0], sizes = [1, 16], strides = [1, 1]} : vector<7x16xf32> to vector<1x16xf32>
    %45 = vector.broadcast %44 : vector<1x16xf32> to vector<16x16xf32>
    %46 = arith.mulf %43, %45 : vector<16x16xf32>
    %c1 = arith.constant 1 : index
    %c0_39 = arith.constant 0 : index
    %47 = vector.load %arg36[%c1, %c0_39] : memref<22x16xf32, #tpu.memory_space<vmem>>, vector<16x16xf32>
    %48 = vector.extract_strided_slice %31 {offsets = [1, 0], sizes = [1, 16], strides = [1, 1]} : vector<7x16xf32> to vector<1x16xf32>
    %49 = vector.broadcast %48 : vector<1x16xf32> to vector<16x16xf32>
    %50 = arith.mulf %47, %49 : vector<16x16xf32>
    %51 = arith.addf %46, %50 : vector<16x16xf32>
    %c2 = arith.constant 2 : index
    %c0_40 = arith.constant 0 : index
    %52 = vector.load %arg36[%c2, %c0_40] : memref<22x16xf32, #tpu.memory_space<vmem>>, vector<16x16xf32>
    %53 = vector.extract_strided_slice %31 {offsets = [2, 0], sizes = [1, 16], strides = [1, 1]} : vector<7x16xf32> to vector<1x16xf32>
    %54 = vector.broadcast %53 : vector<1x16xf32> to vector<16x16xf32>
    %55 = arith.mulf %52, %54 : vector<16x16xf32>
    %56 = arith.addf %51, %55 : vector<16x16xf32>
    %c3_41 = arith.constant 3 : index
    %c0_42 = arith.constant 0 : index
    %57 = vector.load %arg36[%c3_41, %c0_42] : memref<22x16xf32, #tpu.memory_space<vmem>>, vector<16x16xf32>
    %58 = vector.extract_strided_slice %31 {offsets = [3, 0], sizes = [1, 16], strides = [1, 1]} : vector<7x16xf32> to vector<1x16xf32>
    %59 = vector.broadcast %58 : vector<1x16xf32> to vector<16x16xf32>
    %60 = arith.mulf %57, %59 : vector<16x16xf32>
    %61 = arith.addf %56, %60 : vector<16x16xf32>
    %c4 = arith.constant 4 : index
    %c0_43 = arith.constant 0 : index
    %62 = vector.load %arg36[%c4, %c0_43] : memref<22x16xf32, #tpu.memory_space<vmem>>, vector<16x16xf32>
    %63 = vector.extract_strided_slice %31 {offsets = [4, 0], sizes = [1, 16], strides = [1, 1]} : vector<7x16xf32> to vector<1x16xf32>
    %64 = vector.broadcast %63 : vector<1x16xf32> to vector<16x16xf32>
    %65 = arith.mulf %62, %64 : vector<16x16xf32>
    %66 = arith.addf %61, %65 : vector<16x16xf32>
    %c5 = arith.constant 5 : index
    %c0_44 = arith.constant 0 : index
    %67 = vector.load %arg36[%c5, %c0_44] : memref<22x16xf32, #tpu.memory_space<vmem>>, vector<16x16xf32>
    %68 = vector.extract_strided_slice %31 {offsets = [5, 0], sizes = [1, 16], strides = [1, 1]} : vector<7x16xf32> to vector<1x16xf32>
    %69 = vector.broadcast %68 : vector<1x16xf32> to vector<16x16xf32>
    %70 = arith.mulf %67, %69 : vector<16x16xf32>
    %71 = arith.addf %66, %70 : vector<16x16xf32>
    %c6 = arith.constant 6 : index
    %c0_45 = arith.constant 0 : index
    %72 = vector.load %arg36[%c6, %c0_45] : memref<22x16xf32, #tpu.memory_space<vmem>>, vector<16x16xf32>
    %73 = vector.extract_strided_slice %31 {offsets = [6, 0], sizes = [1, 16], strides = [1, 1]} : vector<7x16xf32> to vector<1x16xf32>
    %74 = vector.broadcast %73 : vector<1x16xf32> to vector<16x16xf32>
    %75 = arith.mulf %72, %74 : vector<16x16xf32>
    %76 = arith.addf %71, %75 : vector<16x16xf32>
    %77 = vector.broadcast %32 : vector<1x16xf32> to vector<16x16xf32>
    %78 = arith.addf %76, %77 : vector<16x16xf32>
    %cst_46 = arith.constant dense<0.000000e+00> : vector<16xf32>
    %79 = vector.multi_reduction <add>, %78, %cst_46 [1] : vector<16x16xf32> to vector<16xf32>
    %80 = vector.shape_cast %79 : vector<16xf32> to vector<16x1xf32>
    %cst_47 = arith.constant 1.600000e+01 : f32
    %81 = vector.broadcast %cst_47 : f32 to vector<16x1xf32>
    %82 = arith.divf %80, %81 : vector<16x1xf32>
    %83 = vector.broadcast %82 : vector<16x1xf32> to vector<16x16xf32>
    %84 = arith.subf %78, %83 : vector<16x16xf32>
    %85 = arith.mulf %84, %84 : vector<16x16xf32>
    %cst_48 = arith.constant dense<0.000000e+00> : vector<16xf32>
    %86 = vector.multi_reduction <add>, %85, %cst_48 [1] : vector<16x16xf32> to vector<16xf32>
    %87 = vector.shape_cast %86 : vector<16xf32> to vector<16x1xf32>
    %cst_49 = arith.constant 1.600000e+01 : f32
    %88 = vector.broadcast %cst_49 : f32 to vector<16x1xf32>
    %89 = arith.divf %87, %88 : vector<16x1xf32>
    %90 = vector.broadcast %82 : vector<16x1xf32> to vector<16x16xf32>
    %91 = arith.subf %78, %90 : vector<16x16xf32>
    %cst_50 = arith.constant 9.99999997E-7 : f32
    %92 = vector.broadcast %cst_50 : f32 to vector<16x1xf32>
    %93 = arith.addf %89, %92 : vector<16x1xf32>
    %94 = math.rsqrt %93 : vector<16x1xf32>
    %95 = vector.broadcast %94 : vector<16x1xf32> to vector<16x16xf32>
    %96 = arith.mulf %91, %95 : vector<16x16xf32>
    %97 = vector.broadcast %33 : vector<1x16xf32> to vector<16x16xf32>
    %98 = arith.mulf %96, %97 : vector<16x16xf32>
    %99 = vector.broadcast %34 : vector<1x16xf32> to vector<16x16xf32>
    %100 = arith.addf %98, %99 : vector<16x16xf32>
    %cst_51 = arith.constant dense<0.000000e+00> : vector<16x64xf32>
    %101 = tpu.matmul %100, %35, %cst_51 {dimension_numbers = #tpu.dot_dimension_numbers<[1], [0], [0], [1], [0, 0, 1, 1], [], []>} : vector<16x16xf32>, vector<16x64xf32>, vector<16x64xf32> -> vector<16x64xf32>
    %102 = vector.broadcast %36 : vector<1x64xf32> to vector<16x64xf32>
    %103 = arith.addf %101, %102 : vector<16x64xf32>
    %104 = arith.mulf %103, %103 : vector<16x64xf32>
    %105 = arith.mulf %103, %104 : vector<16x64xf32>
    %cst_52 = arith.constant 4.471500e-02 : f32
    %106 = vector.broadcast %cst_52 : f32 to vector<16x64xf32>
    %107 = arith.mulf %106, %105 : vector<16x64xf32>
    %108 = arith.addf %103, %107 : vector<16x64xf32>
    %cst_53 = arith.constant 0.797884583 : f32
    %109 = vector.broadcast %cst_53 : f32 to vector<16x64xf32>
    %110 = arith.mulf %109, %108 : vector<16x64xf32>
    %111 = math.tanh %110 : vector<16x64xf32>
    %cst_54 = arith.constant 1.000000e+00 : f32
    %112 = vector.broadcast %cst_54 : f32 to vector<16x64xf32>
    %113 = arith.addf %112, %111 : vector<16x64xf32>
    %cst_55 = arith.constant 5.000000e-01 : f32
    %114 = vector.broadcast %cst_55 : f32 to vector<16x64xf32>
    %115 = arith.mulf %114, %113 : vector<16x64xf32>
    %116 = arith.mulf %103, %115 : vector<16x64xf32>
    %cst_56 = arith.constant dense<0.000000e+00> : vector<16x16xf32>
    %117 = tpu.matmul %116, %37, %cst_56 {dimension_numbers = #tpu.dot_dimension_numbers<[1], [0], [0], [1], [0, 0, 1, 1], [], []>} : vector<16x64xf32>, vector<64x16xf32>, vector<16x16xf32> -> vector<16x16xf32>
    %118 = vector.broadcast %38 : vector<1x16xf32> to vector<16x16xf32>
    %119 = arith.addf %117, %118 : vector<16x16xf32>
    %120 = vector.broadcast %39 : vector<1x16xf32> to vector<16x16xf32>
    %121 = arith.mulf %119, %120 : vector<16x16xf32>
    %122 = arith.addf %30, %121 : vector<16x16xf32>
    %c0_57 = arith.constant 0 : index
    %c0_58 = arith.constant 0 : index
    %123 = vector.load %arg15[%c0_57, %c0_58] : memref<1x16xf32, #tpu.memory_space<vmem>>, vector<1x16xf32>
    %c0_59 = arith.constant 0 : index
    %c0_60 = arith.constant 0 : index
    %124 = vector.load %arg16[%c0_59, %c0_60] : memref<1x16xf32, #tpu.memory_space<vmem>>, vector<1x16xf32>
    %c0_61 = arith.constant 0 : index
    %c0_62 = arith.constant 0 : index
    %125 = vector.load %arg17[%c0_61, %c0_62] : memref<8x16xf32, #tpu.memory_space<vmem>>, vector<8x16xf32>
    %c0_63 = arith.constant 0 : index
    %c0_64 = arith.constant 0 : index
    %126 = vector.load %arg18[%c0_63, %c0_64] : memref<8x16xf32, #tpu.memory_space<vmem>>, vector<8x16xf32>
    %c0_65 = arith.constant 0 : index
    %c0_66 = arith.constant 0 : index
    %127 = vector.load %arg19[%c0_65, %c0_66] : memref<16x32xf32, #tpu.memory_space<vmem>>, vector<16x32xf32>
    %c0_67 = arith.constant 0 : index
    %c0_68 = arith.constant 0 : index
    %128 = vector.load %arg20[%c0_67, %c0_68] : memref<16x32xf32, #tpu.memory_space<vmem>>, vector<16x32xf32>
    %c0_69 = arith.constant 0 : index
    %c0_70 = arith.constant 0 : index
    %129 = vector.load %arg21[%c0_69, %c0_70] : memref<1x32xf32, #tpu.memory_space<vmem>>, vector<1x32xf32>
    %cst_71 = arith.constant dense<0.000000e+00> : vector<16xf32>
    %130 = vector.multi_reduction <add>, %122, %cst_71 [1] : vector<16x16xf32> to vector<16xf32>
    %131 = vector.shape_cast %130 : vector<16xf32> to vector<16x1xf32>
    %cst_72 = arith.constant 1.600000e+01 : f32
    %132 = vector.broadcast %cst_72 : f32 to vector<16x1xf32>
    %133 = arith.divf %131, %132 : vector<16x1xf32>
    %134 = vector.broadcast %133 : vector<16x1xf32> to vector<16x16xf32>
    %135 = arith.subf %122, %134 : vector<16x16xf32>
    %136 = arith.mulf %135, %135 : vector<16x16xf32>
    %cst_73 = arith.constant dense<0.000000e+00> : vector<16xf32>
    %137 = vector.multi_reduction <add>, %136, %cst_73 [1] : vector<16x16xf32> to vector<16xf32>
    %138 = vector.shape_cast %137 : vector<16xf32> to vector<16x1xf32>
    %cst_74 = arith.constant 1.600000e+01 : f32
    %139 = vector.broadcast %cst_74 : f32 to vector<16x1xf32>
    %140 = arith.divf %138, %139 : vector<16x1xf32>
    %141 = vector.broadcast %133 : vector<16x1xf32> to vector<16x16xf32>
    %142 = arith.subf %122, %141 : vector<16x16xf32>
    %cst_75 = arith.constant 9.99999997E-7 : f32
    %143 = vector.broadcast %cst_75 : f32 to vector<16x1xf32>
    %144 = arith.addf %140, %143 : vector<16x1xf32>
    %145 = math.rsqrt %144 : vector<16x1xf32>
    %146 = vector.broadcast %145 : vector<16x1xf32> to vector<16x16xf32>
    %147 = arith.mulf %142, %146 : vector<16x16xf32>
    %148 = vector.broadcast %123 : vector<1x16xf32> to vector<16x16xf32>
    %149 = arith.mulf %147, %148 : vector<16x16xf32>
    %150 = vector.broadcast %124 : vector<1x16xf32> to vector<16x16xf32>
    %151 = arith.addf %149, %150 : vector<16x16xf32>
    %cst_76 = arith.constant dense<0.000000e+00> : vector<8x16xf32>
    %152 = tpu.matmul %125, %151, %cst_76 {dimension_numbers = #tpu.dot_dimension_numbers<[1], [0], [0], [1], [0, 0, 1, 1], [], []>} : vector<8x16xf32>, vector<16x16xf32>, vector<8x16xf32> -> vector<8x16xf32>
    %cst_77 = arith.constant dense<0.000000e+00> : vector<8x16xf32>
    %153 = tpu.matmul %126, %151, %cst_77 {dimension_numbers = #tpu.dot_dimension_numbers<[1], [0], [0], [1], [0, 0, 1, 1], [], []>} : vector<8x16xf32>, vector<16x16xf32>, vector<8x16xf32> -> vector<8x16xf32>
    %cst_78 = arith.constant dense<0.000000e+00> : vector<8x32xf32>
    %154 = tpu.matmul %152, %127, %cst_78 {dimension_numbers = #tpu.dot_dimension_numbers<[1], [0], [0], [1], [0, 0, 1, 1], [], []>} : vector<8x16xf32>, vector<16x32xf32>, vector<8x32xf32> -> vector<8x32xf32>
    %cst_79 = arith.constant dense<0.000000e+00> : vector<8x32xf32>
    %155 = tpu.matmul %153, %128, %cst_79 {dimension_numbers = #tpu.dot_dimension_numbers<[1], [0], [0], [1], [0, 0, 1, 1], [], []>} : vector<8x16xf32>, vector<16x32xf32>, vector<8x32xf32> -> vector<8x32xf32>
    %156 = arith.addf %154, %155 : vector<8x32xf32>
    %157 = vector.broadcast %129 : vector<1x32xf32> to vector<8x32xf32>
    %158 = arith.addf %156, %157 : vector<8x32xf32>
    %c0_80 = arith.constant 0 : index
    %c0_81 = arith.constant 0 : index
    %159 = vector.load %arg22[%c0_80, %c0_81] : memref<7x32xf32, #tpu.memory_space<vmem>>, vector<7x32xf32>
    %c0_82 = arith.constant 0 : index
    %c0_83 = arith.constant 0 : index
    %160 = vector.load %arg23[%c0_82, %c0_83] : memref<1x32xf32, #tpu.memory_space<vmem>>, vector<1x32xf32>
    %c0_84 = arith.constant 0 : index
    %c0_85 = arith.constant 0 : index
    %161 = vector.load %arg24[%c0_84, %c0_85] : memref<1x32xf32, #tpu.memory_space<vmem>>, vector<1x32xf32>
    %c0_86 = arith.constant 0 : index
    %c0_87 = arith.constant 0 : index
    %162 = vector.load %arg25[%c0_86, %c0_87] : memref<1x32xf32, #tpu.memory_space<vmem>>, vector<1x32xf32>
    %c0_88 = arith.constant 0 : index
    %c0_89 = arith.constant 0 : index
    %163 = vector.load %arg26[%c0_88, %c0_89] : memref<32x128xf32, #tpu.memory_space<vmem>>, vector<32x128xf32>
    %c0_90 = arith.constant 0 : index
    %c0_91 = arith.constant 0 : index
    %164 = vector.load %arg27[%c0_90, %c0_91] : memref<1x128xf32, #tpu.memory_space<vmem>>, vector<1x128xf32>
    %c0_92 = arith.constant 0 : index
    %c0_93 = arith.constant 0 : index
    %165 = vector.load %arg28[%c0_92, %c0_93] : memref<128x32xf32, #tpu.memory_space<vmem>>, vector<128x32xf32>
    %c0_94 = arith.constant 0 : index
    %c0_95 = arith.constant 0 : index
    %166 = vector.load %arg29[%c0_94, %c0_95] : memref<1x32xf32, #tpu.memory_space<vmem>>, vector<1x32xf32>
    %c0_96 = arith.constant 0 : index
    %c0_97 = arith.constant 0 : index
    %167 = vector.load %arg30[%c0_96, %c0_97] : memref<1x32xf32, #tpu.memory_space<vmem>>, vector<1x32xf32>
    %cst_98 = arith.constant 0.000000e+00 : f32
    %168 = vector.broadcast %cst_98 : f32 to vector<14x32xf32>
    %c0_99 = arith.constant 0 : index
    %c0_100 = arith.constant 0 : index
    %169 = vector.load %arg37[%c0_99, %c0_100] : memref<14x32xf32, #tpu.memory_space<vmem>>, vector<14x32xf32>
    tpu.vector_store %arg37[%c0_99, %c0_100], %168 {strides = array<i32>} : memref<14x32xf32, #tpu.memory_space<vmem>>, vector<14x32xf32>,
    %c3_101 = arith.constant 3 : index
    %c0_102 = arith.constant 0 : index
    %170 = vector.load %arg37[%c3_101, %c0_102] : memref<14x32xf32, #tpu.memory_space<vmem>>, vector<8x32xf32>
    tpu.vector_store %arg37[%c3_101, %c0_102], %158 {strides = array<i32>} : memref<14x32xf32, #tpu.memory_space<vmem>>, vector<8x32xf32>,
    %c0_103 = arith.constant 0 : index
    %c0_104 = arith.constant 0 : index
    %171 = vector.load %arg37[%c0_103, %c0_104] : memref<14x32xf32, #tpu.memory_space<vmem>>, vector<8x32xf32>
    %172 = vector.extract_strided_slice %159 {offsets = [0, 0], sizes = [1, 32], strides = [1, 1]} : vector<7x32xf32> to vector<1x32xf32>
    %173 = vector.broadcast %172 : vector<1x32xf32> to vector<8x32xf32>
    %174 = arith.mulf %171, %173 : vector<8x32xf32>
    %c1_105 = arith.constant 1 : index
    %c0_106 = arith.constant 0 : index
    %175 = vector.load %arg37[%c1_105, %c0_106] : memref<14x32xf32, #tpu.memory_space<vmem>>, vector<8x32xf32>
    %176 = vector.extract_strided_slice %159 {offsets = [1, 0], sizes = [1, 32], strides = [1, 1]} : vector<7x32xf32> to vector<1x32xf32>
    %177 = vector.broadcast %176 : vector<1x32xf32> to vector<8x32xf32>
    %178 = arith.mulf %175, %177 : vector<8x32xf32>
    %179 = arith.addf %174, %178 : vector<8x32xf32>
    %c2_107 = arith.constant 2 : index
    %c0_108 = arith.constant 0 : index
    %180 = vector.load %arg37[%c2_107, %c0_108] : memref<14x32xf32, #tpu.memory_space<vmem>>, vector<8x32xf32>
    %181 = vector.extract_strided_slice %159 {offsets = [2, 0], sizes = [1, 32], strides = [1, 1]} : vector<7x32xf32> to vector<1x32xf32>
    %182 = vector.broadcast %181 : vector<1x32xf32> to vector<8x32xf32>
    %183 = arith.mulf %180, %182 : vector<8x32xf32>
    %184 = arith.addf %179, %183 : vector<8x32xf32>
    %c3_109 = arith.constant 3 : index
    %c0_110 = arith.constant 0 : index
    %185 = vector.load %arg37[%c3_109, %c0_110] : memref<14x32xf32, #tpu.memory_space<vmem>>, vector<8x32xf32>
    %186 = vector.extract_strided_slice %159 {offsets = [3, 0], sizes = [1, 32], strides = [1, 1]} : vector<7x32xf32> to vector<1x32xf32>
    %187 = vector.broadcast %186 : vector<1x32xf32> to vector<8x32xf32>
    %188 = arith.mulf %185, %187 : vector<8x32xf32>
    %189 = arith.addf %184, %188 : vector<8x32xf32>
    %c4_111 = arith.constant 4 : index
    %c0_112 = arith.constant 0 : index
    %190 = vector.load %arg37[%c4_111, %c0_112] : memref<14x32xf32, #tpu.memory_space<vmem>>, vector<8x32xf32>
    %191 = vector.extract_strided_slice %159 {offsets = [4, 0], sizes = [1, 32], strides = [1, 1]} : vector<7x32xf32> to vector<1x32xf32>
    %192 = vector.broadcast %191 : vector<1x32xf32> to vector<8x32xf32>
    %193 = arith.mulf %190, %192 : vector<8x32xf32>
    %194 = arith.addf %189, %193 : vector<8x32xf32>
    %c5_113 = arith.constant 5 : index
    %c0_114 = arith.constant 0 : index
    %195 = vector.load %arg37[%c5_113, %c0_114] : memref<14x32xf32, #tpu.memory_space<vmem>>, vector<8x32xf32>
    %196 = vector.extract_strided_slice %159 {offsets = [5, 0], sizes = [1, 32], strides = [1, 1]} : vector<7x32xf32> to vector<1x32xf32>
    %197 = vector.broadcast %196 : vector<1x32xf32> to vector<8x32xf32>
    %198 = arith.mulf %195, %197 : vector<8x32xf32>
    %199 = arith.addf %194, %198 : vector<8x32xf32>
    %c6_115 = arith.constant 6 : index
    %c0_116 = arith.constant 0 : index
    %200 = vector.load %arg37[%c6_115, %c0_116] : memref<14x32xf32, #tpu.memory_space<vmem>>, vector<8x32xf32>
    %201 = vector.extract_strided_slice %159 {offsets = [6, 0], sizes = [1, 32], strides = [1, 1]} : vector<7x32xf32> to vector<1x32xf32>
    %202 = vector.broadcast %201 : vector<1x32xf32> to vector<8x32xf32>
    %203 = arith.mulf %200, %202 : vector<8x32xf32>
    %204 = arith.addf %199, %203 : vector<8x32xf32>
    %205 = vector.broadcast %160 : vector<1x32xf32> to vector<8x32xf32>
    %206 = arith.addf %204, %205 : vector<8x32xf32>
    %cst_117 = arith.constant dense<0.000000e+00> : vector<8xf32>
    %207 = vector.multi_reduction <add>, %206, %cst_117 [1] : vector<8x32xf32> to vector<8xf32>
    %208 = vector.shape_cast %207 : vector<8xf32> to vector<8x1xf32>
    %cst_118 = arith.constant 3.200000e+01 : f32
    %209 = vector.broadcast %cst_118 : f32 to vector<8x1xf32>
    %210 = arith.divf %208, %209 : vector<8x1xf32>
    %211 = vector.broadcast %210 : vector<8x1xf32> to vector<8x32xf32>
    %212 = arith.subf %206, %211 : vector<8x32xf32>
    %213 = arith.mulf %212, %212 : vector<8x32xf32>
    %cst_119 = arith.constant dense<0.000000e+00> : vector<8xf32>
    %214 = vector.multi_reduction <add>, %213, %cst_119 [1] : vector<8x32xf32> to vector<8xf32>
    %215 = vector.shape_cast %214 : vector<8xf32> to vector<8x1xf32>
    %cst_120 = arith.constant 3.200000e+01 : f32
    %216 = vector.broadcast %cst_120 : f32 to vector<8x1xf32>
    %217 = arith.divf %215, %216 : vector<8x1xf32>
    %218 = vector.broadcast %210 : vector<8x1xf32> to vector<8x32xf32>
    %219 = arith.subf %206, %218 : vector<8x32xf32>
    %cst_121 = arith.constant 9.99999997E-7 : f32
    %220 = vector.broadcast %cst_121 : f32 to vector<8x1xf32>
    %221 = arith.addf %217, %220 : vector<8x1xf32>
    %222 = math.rsqrt %221 : vector<8x1xf32>
    %223 = vector.broadcast %222 : vector<8x1xf32> to vector<8x32xf32>
    %224 = arith.mulf %219, %223 : vector<8x32xf32>
    %225 = vector.broadcast %161 : vector<1x32xf32> to vector<8x32xf32>
    %226 = arith.mulf %224, %225 : vector<8x32xf32>
    %227 = vector.broadcast %162 : vector<1x32xf32> to vector<8x32xf32>
    %228 = arith.addf %226, %227 : vector<8x32xf32>
    %cst_122 = arith.constant dense<0.000000e+00> : vector<8x128xf32>
    %229 = tpu.matmul %228, %163, %cst_122 {dimension_numbers = #tpu.dot_dimension_numbers<[1], [0], [0], [1], [0, 0, 1, 1], [], []>} : vector<8x32xf32>, vector<32x128xf32>, vector<8x128xf32> -> vector<8x128xf32>
    %230 = vector.broadcast %164 : vector<1x128xf32> to vector<8x128xf32>
    %231 = arith.addf %229, %230 : vector<8x128xf32>
    %232 = arith.mulf %231, %231 : vector<8x128xf32>
    %233 = arith.mulf %231, %232 : vector<8x128xf32>
    %cst_123 = arith.constant 4.471500e-02 : f32
    %234 = vector.broadcast %cst_123 : f32 to vector<8x128xf32>
    %235 = arith.mulf %234, %233 : vector<8x128xf32>
    %236 = arith.addf %231, %235 : vector<8x128xf32>
    %cst_124 = arith.constant 0.797884583 : f32
    %237 = vector.broadcast %cst_124 : f32 to vector<8x128xf32>
    %238 = arith.mulf %237, %236 : vector<8x128xf32>
    %239 = math.tanh %238 : vector<8x128xf32>
    %cst_125 = arith.constant 1.000000e+00 : f32
    %240 = vector.broadcast %cst_125 : f32 to vector<8x128xf32>
    %241 = arith.addf %240, %239 : vector<8x128xf32>
    %cst_126 = arith.constant 5.000000e-01 : f32
    %242 = vector.broadcast %cst_126 : f32 to vector<8x128xf32>
    %243 = arith.mulf %242, %241 : vector<8x128xf32>
    %244 = arith.mulf %231, %243 : vector<8x128xf32>
    %cst_127 = arith.constant dense<0.000000e+00> : vector<8x32xf32>
    %245 = tpu.matmul %244, %165, %cst_127 {dimension_numbers = #tpu.dot_dimension_numbers<[1], [0], [0], [1], [0, 0, 1, 1], [], []>} : vector<8x128xf32>, vector<128x32xf32>, vector<8x32xf32> -> vector<8x32xf32>
    %246 = vector.broadcast %166 : vector<1x32xf32> to vector<8x32xf32>
    %247 = arith.addf %245, %246 : vector<8x32xf32>
    %248 = vector.broadcast %167 : vector<1x32xf32> to vector<8x32xf32>
    %249 = arith.mulf %247, %248 : vector<8x32xf32>
    %250 = arith.addf %158, %249 : vector<8x32xf32>
    %c0_128 = arith.constant 0 : index
    %c0_129 = arith.constant 0 : index
    %251 = vector.load %arg31[%c0_128, %c0_129] : memref<1x32xf32, #tpu.memory_space<vmem>>, vector<1x32xf32>
    %c0_130 = arith.constant 0 : index
    %c0_131 = arith.constant 0 : index
    %252 = vector.load %arg32[%c0_130, %c0_131] : memref<1x32xf32, #tpu.memory_space<vmem>>, vector<1x32xf32>
    %c0_132 = arith.constant 0 : index
    %c0_133 = arith.constant 0 : index
    %253 = vector.load %arg33[%c0_132, %c0_133] : memref<32x10xf32, #tpu.memory_space<vmem>>, vector<32x10xf32>
    %c0_134 = arith.constant 0 : index
    %c0_135 = arith.constant 0 : index
    %254 = vector.load %arg34[%c0_134, %c0_135] : memref<1x10xf32, #tpu.memory_space<vmem>>, vector<1x10xf32>
    %cst_136 = arith.constant dense<0.000000e+00> : vector<32xf32>
    %255 = vector.multi_reduction <add>, %250, %cst_136 [0] : vector<8x32xf32> to vector<32xf32>
    %256 = vector.shape_cast %255 : vector<32xf32> to vector<1x32xf32>
    %cst_137 = arith.constant 8.000000e+00 : f32
    %257 = vector.broadcast %cst_137 : f32 to vector<1x32xf32>
    %258 = arith.divf %256, %257 : vector<1x32xf32>
    %cst_138 = arith.constant dense<0.000000e+00> : vector<1xf32>
    %259 = vector.multi_reduction <add>, %258, %cst_138 [1] : vector<1x32xf32> to vector<1xf32>
    %260 = vector.shape_cast %259 : vector<1xf32> to vector<1x1xf32>
    %cst_139 = arith.constant 3.200000e+01 : f32
    %261 = vector.broadcast %cst_139 : f32 to vector<1x1xf32>
    %262 = arith.divf %260, %261 : vector<1x1xf32>
    %263 = vector.broadcast %262 : vector<1x1xf32> to vector<1x32xf32>
    %264 = arith.subf %258, %263 : vector<1x32xf32>
    %265 = arith.mulf %264, %264 : vector<1x32xf32>
    %cst_140 = arith.constant dense<0.000000e+00> : vector<1xf32>
    %266 = vector.multi_reduction <add>, %265, %cst_140 [1] : vector<1x32xf32> to vector<1xf32>
    %267 = vector.shape_cast %266 : vector<1xf32> to vector<1x1xf32>
    %cst_141 = arith.constant 3.200000e+01 : f32
    %268 = vector.broadcast %cst_141 : f32 to vector<1x1xf32>
    %269 = arith.divf %267, %268 : vector<1x1xf32>
    %270 = vector.broadcast %262 : vector<1x1xf32> to vector<1x32xf32>
    %271 = arith.subf %258, %270 : vector<1x32xf32>
    %cst_142 = arith.constant 9.99999997E-7 : f32
    %272 = vector.broadcast %cst_142 : f32 to vector<1x1xf32>
    %273 = arith.addf %269, %272 : vector<1x1xf32>
    %274 = math.rsqrt %273 : vector<1x1xf32>
    %275 = vector.broadcast %274 : vector<1x1xf32> to vector<1x32xf32>
    %276 = arith.mulf %271, %275 : vector<1x32xf32>
    %277 = arith.mulf %276, %251 : vector<1x32xf32>
    %278 = arith.addf %277, %252 : vector<1x32xf32>
    %cst_143 = arith.constant dense<0.000000e+00> : vector<1x10xf32>
    %279 = tpu.matmul %278, %253, %cst_143 {dimension_numbers = #tpu.dot_dimension_numbers<[1], [0], [0], [1], [0, 0, 1, 1], [], []>} : vector<1x32xf32>, vector<32x10xf32>, vector<1x10xf32> -> vector<1x10xf32>
    %280 = arith.addf %279, %254 : vector<1x10xf32>
    %c0_144 = arith.constant 0 : index
    %c0_145 = arith.constant 0 : index
    %c0_146 = arith.constant 0 : index
    %281 = vector.load %arg35[%c0_144, %c0_145, %c0_146] : memref<1x1x10xf32, #tpu.memory_space<vmem>>, vector<1x1x10xf32>
    %282 = vector.shape_cast %281 : vector<1x1x10xf32> to vector<1x10xf32>
    %283 = vector.shape_cast %280 : vector<1x10xf32> to vector<1x1x10xf32>
    tpu.vector_store %arg35[%c0_144, %c0_145, %c0_146], %283 {strides = array<i32>} : memref<1x1x10xf32, #tpu.memory_space<vmem>>, vector<1x1x10xf32>,
    return
  }
  func.func @transform_0(%arg0: i32) -> (i32, i32, i32) {
    %c0_i32 = arith.constant 0 : i32
    %c0_i32_0 = arith.constant 0 : i32
    %c0_i32_1 = arith.constant 0 : i32
    return %arg0, %c0_i32, %c0_i32_0 : i32, i32, i32
  }
  func.func @transform_1(%arg0: i32) -> (i32, i32) {
    %c0_i32 = arith.constant 0 : i32
    %c0_i32_0 = arith.constant 0 : i32
    %c0_i32_1 = arith.constant 0 : i32
    return %c0_i32, %c0_i32_0 : i32, i32
  }
  func.func @transform_2(%arg0: i32) -> (i32, i32) {
    %c0_i32 = arith.constant 0 : i32
    %c0_i32_0 = arith.constant 0 : i32
    %c0_i32_1 = arith.constant 0 : i32
    return %c0_i32, %c0_i32_0 : i32, i32
  }
  func.func @transform_3(%arg0: i32) -> (i32, i32) {
    %c0_i32 = arith.constant 0 : i32
    %c0_i32_0 = arith.constant 0 : i32
    %c0_i32_1 = arith.constant 0 : i32
    return %c0_i32, %c0_i32_0 : i32, i32
  }
  func.func @transform_4(%arg0: i32) -> (i32, i32) {
    %c0_i32 = arith.constant 0 : i32
    %c0_i32_0 = arith.constant 0 : i32
    %c0_i32_1 = arith.constant 0 : i32
    return %c0_i32, %c0_i32_0 : i32, i32
  }
  func.func @transform_5(%arg0: i32) -> (i32, i32) {
    %c0_i32 = arith.constant 0 : i32
    %c0_i32_0 = arith.constant 0 : i32
    %c0_i32_1 = arith.constant 0 : i32
    return %c0_i32, %c0_i32_0 : i32, i32
  }
  func.func @transform_6(%arg0: i32) -> (i32, i32) {
    %c0_i32 = arith.constant 0 : i32
    %c0_i32_0 = arith.constant 0 : i32
    %c0_i32_1 = arith.constant 0 : i32
    return %c0_i32, %c0_i32_0 : i32, i32
  }
  func.func @transform_7(%arg0: i32) -> (i32, i32) {
    %c0_i32 = arith.constant 0 : i32
    %c0_i32_0 = arith.constant 0 : i32
    %c0_i32_1 = arith.constant 0 : i32
    return %c0_i32, %c0_i32_0 : i32, i32
  }
  func.func @transform_8(%arg0: i32) -> (i32, i32) {
    %c0_i32 = arith.constant 0 : i32
    %c0_i32_0 = arith.constant 0 : i32
    %c0_i32_1 = arith.constant 0 : i32
    return %c0_i32, %c0_i32_0 : i32, i32
  }
  func.func @transform_9(%arg0: i32) -> (i32, i32) {
    %c0_i32 = arith.constant 0 : i32
    %c0_i32_0 = arith.constant 0 : i32
    %c0_i32_1 = arith.constant 0 : i32
    return %c0_i32, %c0_i32_0 : i32, i32
  }
  func.func @transform_10(%arg0: i32) -> (i32, i32) {
    %c0_i32 = arith.constant 0 : i32
    %c0_i32_0 = arith.constant 0 : i32
    %c0_i32_1 = arith.constant 0 : i32
    return %c0_i32, %c0_i32_0 : i32, i32
  }
  func.func @transform_11(%arg0: i32) -> (i32, i32) {
    %c0_i32 = arith.constant 0 : i32
    %c0_i32_0 = arith.constant 0 : i32
    %c0_i32_1 = arith.constant 0 : i32
    return %c0_i32, %c0_i32_0 : i32, i32
  }
  func.func @transform_12(%arg0: i32) -> (i32, i32) {
    %c0_i32 = arith.constant 0 : i32
    %c0_i32_0 = arith.constant 0 : i32
    %c0_i32_1 = arith.constant 0 : i32
    return %c0_i32, %c0_i32_0 : i32, i32
  }
  func.func @transform_13(%arg0: i32) -> (i32, i32) {
    %c0_i32 = arith.constant 0 : i32
    %c0_i32_0 = arith.constant 0 : i32
    %c0_i32_1 = arith.constant 0 : i32
    return %c0_i32, %c0_i32_0 : i32, i32
  }
  func.func @transform_14(%arg0: i32) -> (i32, i32) {
    %c0_i32 = arith.constant 0 : i32
    %c0_i32_0 = arith.constant 0 : i32
    %c0_i32_1 = arith.constant 0 : i32
    return %c0_i32, %c0_i32_0 : i32, i32
  }
  func.func @transform_15(%arg0: i32) -> (i32, i32) {
    %c0_i32 = arith.constant 0 : i32
    %c0_i32_0 = arith.constant 0 : i32
    %c0_i32_1 = arith.constant 0 : i32
    return %c0_i32, %c0_i32_0 : i32, i32
  }
  func.func @transform_16(%arg0: i32) -> (i32, i32) {
    %c0_i32 = arith.constant 0 : i32
    %c0_i32_0 = arith.constant 0 : i32
    %c0_i32_1 = arith.constant 0 : i32
    return %c0_i32, %c0_i32_0 : i32, i32
  }
  func.func @transform_17(%arg0: i32) -> (i32, i32) {
    %c0_i32 = arith.constant 0 : i32
    %c0_i32_0 = arith.constant 0 : i32
    %c0_i32_1 = arith.constant 0 : i32
    return %c0_i32, %c0_i32_0 : i32, i32
  }
  func.func @transform_18(%arg0: i32) -> (i32, i32) {
    %c0_i32 = arith.constant 0 : i32
    %c0_i32_0 = arith.constant 0 : i32
    %c0_i32_1 = arith.constant 0 : i32
    return %c0_i32, %c0_i32_0 : i32, i32
  }
  func.func @transform_19(%arg0: i32) -> (i32, i32) {
    %c0_i32 = arith.constant 0 : i32
    %c0_i32_0 = arith.constant 0 : i32
    %c0_i32_1 = arith.constant 0 : i32
    return %c0_i32, %c0_i32_0 : i32, i32
  }
  func.func @transform_20(%arg0: i32) -> (i32, i32) {
    %c0_i32 = arith.constant 0 : i32
    %c0_i32_0 = arith.constant 0 : i32
    %c0_i32_1 = arith.constant 0 : i32
    return %c0_i32, %c0_i32_0 : i32, i32
  }
  func.func @transform_21(%arg0: i32) -> (i32, i32) {
    %c0_i32 = arith.constant 0 : i32
    %c0_i32_0 = arith.constant 0 : i32
    %c0_i32_1 = arith.constant 0 : i32
    return %c0_i32, %c0_i32_0 : i32, i32
  }
  func.func @transform_22(%arg0: i32) -> (i32, i32) {
    %c0_i32 = arith.constant 0 : i32
    %c0_i32_0 = arith.constant 0 : i32
    %c0_i32_1 = arith.constant 0 : i32
    return %c0_i32, %c0_i32_0 : i32, i32
  }
  func.func @transform_23(%arg0: i32) -> (i32, i32) {
    %c0_i32 = arith.constant 0 : i32
    %c0_i32_0 = arith.constant 0 : i32
    %c0_i32_1 = arith.constant 0 : i32
    return %c0_i32, %c0_i32_0 : i32, i32
  }
  func.func @transform_24(%arg0: i32) -> (i32, i32) {
    %c0_i32 = arith.constant 0 : i32
    %c0_i32_0 = arith.constant 0 : i32
    %c0_i32_1 = arith.constant 0 : i32
    return %c0_i32, %c0_i32_0 : i32, i32
  }
  func.func @transform_25(%arg0: i32) -> (i32, i32) {
    %c0_i32 = arith.constant 0 : i32
    %c0_i32_0 = arith.constant 0 : i32
    %c0_i32_1 = arith.constant 0 : i32
    return %c0_i32, %c0_i32_0 : i32, i32
  }
  func.func @transform_26(%arg0: i32) -> (i32, i32) {
    %c0_i32 = arith.constant 0 : i32
    %c0_i32_0 = arith.constant 0 : i32
    %c0_i32_1 = arith.constant 0 : i32
    return %c0_i32, %c0_i32_0 : i32, i32
  }
  func.func @transform_27(%arg0: i32) -> (i32, i32) {
    %c0_i32 = arith.constant 0 : i32
    %c0_i32_0 = arith.constant 0 : i32
    %c0_i32_1 = arith.constant 0 : i32
    return %c0_i32, %c0_i32_0 : i32, i32
  }
  func.func @transform_28(%arg0: i32) -> (i32, i32) {
    %c0_i32 = arith.constant 0 : i32
    %c0_i32_0 = arith.constant 0 : i32
    %c0_i32_1 = arith.constant 0 : i32
    return %c0_i32, %c0_i32_0 : i32, i32
  }
  func.func @transform_29(%arg0: i32) -> (i32, i32) {
    %c0_i32 = arith.constant 0 : i32
    %c0_i32_0 = arith.constant 0 : i32
    %c0_i32_1 = arith.constant 0 : i32
    return %c0_i32, %c0_i32_0 : i32, i32
  }
  func.func @transform_30(%arg0: i32) -> (i32, i32) {
    %c0_i32 = arith.constant 0 : i32
    %c0_i32_0 = arith.constant 0 : i32
    %c0_i32_1 = arith.constant 0 : i32
    return %c0_i32, %c0_i32_0 : i32, i32
  }
  func.func @transform_31(%arg0: i32) -> (i32, i32) {
    %c0_i32 = arith.constant 0 : i32
    %c0_i32_0 = arith.constant 0 : i32
    %c0_i32_1 = arith.constant 0 : i32
    return %c0_i32, %c0_i32_0 : i32, i32
  }
  func.func @transform_32(%arg0: i32) -> (i32, i32) {
    %c0_i32 = arith.constant 0 : i32
    %c0_i32_0 = arith.constant 0 : i32
    %c0_i32_1 = arith.constant 0 : i32
    return %c0_i32, %c0_i32_0 : i32, i32
  }
  func.func @transform_33(%arg0: i32) -> (i32, i32) {
    %c0_i32 = arith.constant 0 : i32
    %c0_i32_0 = arith.constant 0 : i32
    %c0_i32_1 = arith.constant 0 : i32
    return %c0_i32, %c0_i32_0 : i32, i32
  }
  func.func @transform_34(%arg0: i32) -> (i32, i32, i32) {
    %c0_i32 = arith.constant 0 : i32
    %c0_i32_0 = arith.constant 0 : i32
    %c0_i32_1 = arith.constant 0 : i32
    return %arg0, %c0_i32, %c0_i32_0 : i32, i32, i32
  }
}

</mosaic_0001>

<llo_original>
// kernel: tpu_custom_call.1
$region0: #{tpu_custom_call.1}
  #allocation0 [shape = 'u32[]', space=smem, size = 0x4, offset = 0x4, fixed_abs, tag = 'smem constant byte address 0x4 - core index']
  #allocation1 [shape = 'u32[72,128]{1,0:T(1,128)}', space=vmem, size = 0x9000, scoped, tag = 'internal scratch']
  #allocation2 [shape = 'f32[22,16]{1,0:T(8,128)}', space=vmem, size = 0x3000, scoped, tag = 'scratch operand']
  #allocation3 [shape = 'f32[14,32]{1,0:T(8,128)}', space=vmem, size = 0x2000, scoped, tag = 'scratch operand']
  %s0 = inlined_call_operand.smem [shape: u32[35], index: -1, kind: input, shape index: {}]
  %s1 = sld [smem:[%s0]]
  %s2 = scalar_lea.smem %s0, 1
  %s3 = sld [smem:[%s2]]
  %s4 = scalar_lea.smem %s0, 2
  %s5 = sld [smem:[%s4]]
  %s6 = scalar_lea.smem %s0, 3
  %s7 = sld [smem:[%s6]]
  %s8 = scalar_lea.smem %s0, 4
  %s9 = sld [smem:[%s8]]
  %s10 = scalar_lea.smem %s0, 5
  %s11 = sld [smem:[%s10]]
  %s12 = scalar_lea.smem %s0, 6
  %s13 = sld [smem:[%s12]]
  %s14 = scalar_lea.smem %s0, 7
  %s15 = sld [smem:[%s14]]
  %s16 = scalar_lea.smem %s0, 8
  %s17 = sld [smem:[%s16]]
  %s18 = scalar_lea.smem %s0, 9
  %s19 = sld [smem:[%s18]]
  %s20 = scalar_lea.smem %s0, 10
  %s21 = sld [smem:[%s20]]
  %s22 = scalar_lea.smem %s0, 11
  %s23 = sld [smem:[%s22]]
  %s24 = scalar_lea.smem %s0, 12
  %s25 = sld [smem:[%s24]]
  %s26 = scalar_lea.smem %s0, 13
  %s27 = sld [smem:[%s26]]
  %s28 = scalar_lea.smem %s0, 14
  %s29 = sld [smem:[%s28]]
  %s30 = scalar_lea.smem %s0, 15
  %s31 = sld [smem:[%s30]]
  %s32 = scalar_lea.smem %s0, 16
  %s33 = sld [smem:[%s32]]
  %s34 = scalar_lea.smem %s0, 17
  %s35 = sld [smem:[%s34]]
  %s36 = scalar_lea.smem %s0, 18
  %s37 = sld [smem:[%s36]]
  %s38 = scalar_lea.smem %s0, 19
  %s39 = sld [smem:[%s38]]
  %s40 = scalar_lea.smem %s0, 20
  %s41 = sld [smem:[%s40]]
  %s42 = scalar_lea.smem %s0, 21
  %s43 = sld [smem:[%s42]]
  %s44 = scalar_lea.smem %s0, 22
  %s45 = sld [smem:[%s44]]
  %s46 = scalar_lea.smem %s0, 23
  %s47 = sld [smem:[%s46]]
  %s48 = scalar_lea.smem %s0, 24
  %s49 = sld [smem:[%s48]]
  %s50 = scalar_lea.smem %s0, 25
  %s51 = sld [smem:[%s50]]
  %s52 = scalar_lea.smem %s0, 26
  %s53 = sld [smem:[%s52]]
  %s54 = scalar_lea.smem %s0, 27
  %s55 = sld [smem:[%s54]]
  %s56 = scalar_lea.smem %s0, 28
  %s57 = sld [smem:[%s56]]
  %s58 = scalar_lea.smem %s0, 29
  %s59 = sld [smem:[%s58]]
  %s60 = scalar_lea.smem %s0, 30
  %s61 = sld [smem:[%s60]]
  %s62 = scalar_lea.smem %s0, 31
  %s63 = sld [smem:[%s62]]
  %s64 = scalar_lea.smem %s0, 32
  %s65 = sld [smem:[%s64]]
  %s66 = scalar_lea.smem %s0, 33
  %s67 = sld [smem:[%s66]]
  %s68 = scalar_lea.smem %s0, 34
  %s69 = sld [smem:[%s68]]
  %s70 = sld [smem:[#allocation0]]
  $region169: #{tpu_custom_call.1} parent=0
    _
  %s72 = ssub.s32 1, %s70
  %s73 = scalar_select 0, %s72, %s70
  $region1: #{tpu_custom_call.1} parent=0
    #allocation4 [shape = 'u8[1024]{0}', space=vmem, size = 0x400, scoped, tag = 'output window, operand 0']
    #allocation5 [shape = 's32[2]{0}', space=sflag, size = 0x8, scoped, tag = 'scoped memory for tpu_custom_call.1']
    %74 = vsyncpa [#allocation5], 0
    %s75 = scalar_lea.sflag [#allocation5], 1
    %76 = vsyncpa %s75, 0
    loop: start=0, step=1, limit=4
    $region2: #{tpu_custom_call.1} parent=1 // loop_pre_header
      _
    $region3: #{tpu_custom_call.1} parent=1 // loop_header
      %s78 = sphi 0, %s82
      %p79 = scmp.ge.s32.totalorder %s78, 4
      %s88 = sphi 0, %s90
      %s91 = sphi 0, %s88
      %s92 = sphi 0, %s91
      %s108 = sphi 0, %s92
      %s112 = sphi 0, %s112
      %s114 = sphi 0, %s112
      %s115 = sphi 0, %s114
      %s129 = sphi 0, %s115
      %s133 = sphi 0, %s133
      %s135 = sphi 0, %s133
      %s136 = sphi 0, %s135
      %s150 = sphi 0, %s136
      %s154 = sphi 0, %s154
      %s156 = sphi 0, %s154
      %s157 = sphi 0, %s156
      %s171 = sphi 0, %s157
      %s175 = sphi 0, %s175
      %s177 = sphi 0, %s175
      %s178 = sphi 0, %s177
      %s192 = sphi 0, %s178
      %s196 = sphi 0, %s196
      %s198 = sphi 0, %s196
      %s199 = sphi 0, %s198
      %s213 = sphi 0, %s199
      %s217 = sphi 0, %s217
      %s219 = sphi 0, %s217
      %s220 = sphi 0, %s219
      %s234 = sphi 0, %s220
      %s238 = sphi 0, %s238
      %s240 = sphi 0, %s238
      %s241 = sphi 0, %s240
      %s255 = sphi 0, %s241
      %s259 = sphi 0, %s259
      %s261 = sphi 0, %s259
      %s262 = sphi 0, %s261
      %s276 = sphi 0, %s262
      %s280 = sphi 0, %s280
      %s282 = sphi 0, %s280
      %s283 = sphi 0, %s282
      %s297 = sphi 0, %s283
      %s301 = sphi 0, %s301
      %s303 = sphi 0, %s301
      %s304 = sphi 0, %s303
      %s318 = sphi 0, %s304
      %s322 = sphi 0, %s322
      %s324 = sphi 0, %s322
      %s325 = sphi 0, %s324
      %s339 = sphi 0, %s325
      %s343 = sphi 0, %s343
      %s345 = sphi 0, %s343
      %s346 = sphi 0, %s345
      %s360 = sphi 0, %s346
      %s364 = sphi 0, %s364
      %s366 = sphi 0, %s364
      %s367 = sphi 0, %s366
      %s381 = sphi 0, %s367
      %s385 = sphi 0, %s385
      %s387 = sphi 0, %s385
      %s388 = sphi 0, %s387
      %s402 = sphi 0, %s388
      %s406 = sphi 0, %s406
      %s408 = sphi 0, %s406
      %s409 = sphi 0, %s408
      %s423 = sphi 0, %s409
      %s427 = sphi 0, %s427
      %s429 = sphi 0, %s427
      %s430 = sphi 0, %s429
      %s444 = sphi 0, %s430
      %s448 = sphi 0, %s448
      %s450 = sphi 0, %s448
      %s451 = sphi 0, %s450
      %s465 = sphi 0, %s451
      %s469 = sphi 0, %s469
      %s471 = sphi 0, %s469
      %s472 = sphi 0, %s471
      %s486 = sphi 0, %s472
      %s490 = sphi 0, %s490
      %s492 = sphi 0, %s490
      %s493 = sphi 0, %s492
      %s507 = sphi 0, %s493
      %s511 = sphi 0, %s511
      %s513 = sphi 0, %s511
      %s514 = sphi 0, %s513
      %s528 = sphi 0, %s514
      %s532 = sphi 0, %s532
      %s534 = sphi 0, %s532
      %s535 = sphi 0, %s534
      %s549 = sphi 0, %s535
      %s553 = sphi 0, %s553
      %s555 = sphi 0, %s553
      %s556 = sphi 0, %s555
      %s570 = sphi 0, %s556
      %s574 = sphi 0, %s574
      %s576 = sphi 0, %s574
      %s577 = sphi 0, %s576
      %s591 = sphi 0, %s577
      %s595 = sphi 0, %s595
      %s597 = sphi 0, %s595
      %s598 = sphi 0, %s597
      %s612 = sphi 0, %s598
      %s616 = sphi 0, %s616
      %s618 = sphi 0, %s616
      %s619 = sphi 0, %s618
      %s633 = sphi 0, %s619
      %s637 = sphi 0, %s637
      %s639 = sphi 0, %s637
      %s640 = sphi 0, %s639
      %s654 = sphi 0, %s640
      %s658 = sphi 0, %s658
      %s660 = sphi 0, %s658
      %s661 = sphi 0, %s660
      %s675 = sphi 0, %s661
      %s679 = sphi 0, %s679
      %s681 = sphi 0, %s679
      %s682 = sphi 0, %s681
      %s696 = sphi 0, %s682
      %s700 = sphi 0, %s700
      %s702 = sphi 0, %s700
      %s703 = sphi 0, %s702
      %s717 = sphi 0, %s703
      %s721 = sphi 0, %s721
      %s723 = sphi 0, %s721
      %s724 = sphi 0, %s723
      %s738 = sphi 0, %s724
      %s742 = sphi 0, %s742
      %s744 = sphi 0, %s742
      %s745 = sphi 0, %s744
      %s759 = sphi 0, %s745
      %s763 = sphi 0, %s763
      %s765 = sphi 0, %s763
      %s766 = sphi 0, %s765
      %s780 = sphi 0, %s766
      %s784 = sphi 0, %s784
      %s786 = sphi 0, %s784
      %s787 = sphi 0, %s786
      %s801 = sphi 0, %s787
      %s807 = sphi 0, %s809
      %s810 = sphi 0, %s807
      %s811 = sphi 0, %s810
      %s827 = sphi 0, %s811
    $region4: #{tpu_custom_call.1} parent=1 // loop_header_branch
      %81 = sbr.rel (%p79) target = $region8
    $region5: #{tpu_custom_call.1} parent=1 // loop_body
      %s83 = ssub.s32 %s78, 1
      %s84 = ssub.s32 %s78, 2
      %s85 = sadd.s32 %s78, 1
      %s86 = ssub.s32 %s78, %s85
      %p87 = scmp.eq.s32.totalorder %s86, 0
      %s89 = sadd.s32 %s88, 1
      %s90 = scalar_select %p87, %s88, %s89
      %p93 = pneg %p87
      %p94 = scmp.eq.s32.totalorder %s78, 1
      %p95 = por %p93, %p94
      %p96 = scmp.ne.s32.totalorder %s88, %s91
      %p97 = scmp.eq.s32.totalorder %s78, 0
      %p98 = por %p96, %p97
      %p99 = scmp.ne.s32.totalorder %s88, %s91
      %p100 = scmp.eq.s32.totalorder %s83, 1
      %p101 = por %p99, %p100
      %p102 = scmp.ne.s32.totalorder %s91, %s92
      %p103 = scmp.eq.s32.totalorder %s83, 0
      %p104 = por %p102, %p103
      %p105 = scmp.ne.s32.totalorder %s91, %s92
      %p106 = scmp.eq.s32.totalorder %s84, 1
      %p107 = por %p105, %p106
      %p109 = scmp.ne.s32.totalorder %s92, %s108
      %p110 = scmp.eq.s32.totalorder %s84, 0
      %p111 = por %p109, %p110
      %s113 = sadd.s32 %s112, 1
      %p116 = scmp.eq.s32.totalorder %s78, 1
      %p117 = scmp.ne.s32.totalorder %s112, %s114
      %p118 = scmp.eq.s32.totalorder %s78, 0
      %p119 = por %p117, %p118
      %p120 = scmp.ne.s32.totalorder %s112, %s114
      %p121 = scmp.eq.s32.totalorder %s83, 1
      %p122 = por %p120, %p121
      %p123 = scmp.ne.s32.totalorder %s114, %s115
      %p124 = scmp.eq.s32.totalorder %s83, 0
      %p125 = por %p123, %p124
      %p126 = scmp.ne.s32.totalorder %s114, %s115
      %p127 = scmp.eq.s32.totalorder %s84, 1
      %p128 = por %p126, %p127
      %p130 = scmp.ne.s32.totalorder %s115, %s129
      %p131 = scmp.eq.s32.totalorder %s84, 0
      %p132 = por %p130, %p131
      %s134 = sadd.s32 %s133, 1
      %p137 = scmp.eq.s32.totalorder %s78, 1
      %p138 = scmp.ne.s32.totalorder %s133, %s135
      %p139 = scmp.eq.s32.totalorder %s78, 0
      %p140 = por %p138, %p139
      %p141 = scmp.ne.s32.totalorder %s133, %s135
      %p142 = scmp.eq.s32.totalorder %s83, 1
      %p143 = por %p141, %p142
      %p144 = scmp.ne.s32.totalorder %s135, %s136
      %p145 = scmp.eq.s32.totalorder %s83, 0
      %p146 = por %p144, %p145
      %p147 = scmp.ne.s32.totalorder %s135, %s136
      %p148 = scmp.eq.s32.totalorder %s84, 1
      %p149 = por %p147, %p148
      %p151 = scmp.ne.s32.totalorder %s136, %s150
      %p152 = scmp.eq.s32.totalorder %s84, 0
      %p153 = por %p151, %p152
      %s155 = sadd.s32 %s154, 1
      %p158 = scmp.eq.s32.totalorder %s78, 1
      %p159 = scmp.ne.s32.totalorder %s154, %s156
      %p160 = scmp.eq.s32.totalorder %s78, 0
      %p161 = por %p159, %p160
      %p162 = scmp.ne.s32.totalorder %s154, %s156
      %p163 = scmp.eq.s32.totalorder %s83, 1
      %p164 = por %p162, %p163
      %p165 = scmp.ne.s32.totalorder %s156, %s157
      %p166 = scmp.eq.s32.totalorder %s83, 0
      %p167 = por %p165, %p166
      %p168 = scmp.ne.s32.totalorder %s156, %s157
      %p169 = scmp.eq.s32.totalorder %s84, 1
      %p170 = por %p168, %p169
      %p172 = scmp.ne.s32.totalorder %s157, %s171
      %p173 = scmp.eq.s32.totalorder %s84, 0
      %p174 = por %p172, %p173
      %s176 = sadd.s32 %s175, 1
      %p179 = scmp.eq.s32.totalorder %s78, 1
      %p180 = scmp.ne.s32.totalorder %s175, %s177
      %p181 = scmp.eq.s32.totalorder %s78, 0
      %p182 = por %p180, %p181
      %p183 = scmp.ne.s32.totalorder %s175, %s177
      %p184 = scmp.eq.s32.totalorder %s83, 1
      %p185 = por %p183, %p184
      %p186 = scmp.ne.s32.totalorder %s177, %s178
      %p187 = scmp.eq.s32.totalorder %s83, 0
      %p188 = por %p186, %p187
      %p189 = scmp.ne.s32.totalorder %s177, %s178
      %p190 = scmp.eq.s32.totalorder %s84, 1
      %p191 = por %p189, %p190
      %p193 = scmp.ne.s32.totalorder %s178, %s192
      %p194 = scmp.eq.s32.totalorder %s84, 0
      %p195 = por %p193, %p194
      %s197 = sadd.s32 %s196, 1
      %p200 = scmp.eq.s32.totalorder %s78, 1
      %p201 = scmp.ne.s32.totalorder %s196, %s198
      %p202 = scmp.eq.s32.totalorder %s78, 0
      %p203 = por %p201, %p202
      %p204 = scmp.ne.s32.totalorder %s196, %s198
      %p205 = scmp.eq.s32.totalorder %s83, 1
      %p206 = por %p204, %p205
      %p207 = scmp.ne.s32.totalorder %s198, %s199
      %p208 = scmp.eq.s32.totalorder %s83, 0
      %p209 = por %p207, %p208
      %p210 = scmp.ne.s32.totalorder %s198, %s199
      %p211 = scmp.eq.s32.totalorder %s84, 1
      %p212 = por %p210, %p211
      %p214 = scmp.ne.s32.totalorder %s199, %s213
      %p215 = scmp.eq.s32.totalorder %s84, 0
      %p216 = por %p214, %p215
      %s218 = sadd.s32 %s217, 1
      %p221 = scmp.eq.s32.totalorder %s78, 1
      %p222 = scmp.ne.s32.totalorder %s217, %s219
      %p223 = scmp.eq.s32.totalorder %s78, 0
      %p224 = por %p222, %p223
      %p225 = scmp.ne.s32.totalorder %s217, %s219
      %p226 = scmp.eq.s32.totalorder %s83, 1
      %p227 = por %p225, %p226
      %p228 = scmp.ne.s32.totalorder %s219, %s220
      %p229 = scmp.eq.s32.totalorder %s83, 0
      %p230 = por %p228, %p229
      %p231 = scmp.ne.s32.totalorder %s219, %s220
      %p232 = scmp.eq.s32.totalorder %s84, 1
      %p233 = por %p231, %p232
      %p235 = scmp.ne.s32.totalorder %s220, %s234
      %p236 = scmp.eq.s32.totalorder %s84, 0
      %p237 = por %p235, %p236
      %s239 = sadd.s32 %s238, 1
      %p242 = scmp.eq.s32.totalorder %s78, 1
      %p243 = scmp.ne.s32.totalorder %s238, %s240
      %p244 = scmp.eq.s32.totalorder %s78, 0
      %p245 = por %p243, %p244
      %p246 = scmp.ne.s32.totalorder %s238, %s240
      %p247 = scmp.eq.s32.totalorder %s83, 1
      %p248 = por %p246, %p247
      %p249 = scmp.ne.s32.totalorder %s240, %s241
      %p250 = scmp.eq.s32.totalorder %s83, 0
      %p251 = por %p249, %p250
      %p252 = scmp.ne.s32.totalorder %s240, %s241
      %p253 = scmp.eq.s32.totalorder %s84, 1
      %p254 = por %p252, %p253
      %p256 = scmp.ne.s32.totalorder %s241, %s255
      %p257 = scmp.eq.s32.totalorder %s84, 0
      %p258 = por %p256, %p257
      %s260 = sadd.s32 %s259, 1
      %p263 = scmp.eq.s32.totalorder %s78, 1
      %p264 = scmp.ne.s32.totalorder %s259, %s261
      %p265 = scmp.eq.s32.totalorder %s78, 0
      %p266 = por %p264, %p265
      %p267 = scmp.ne.s32.totalorder %s259, %s261
      %p268 = scmp.eq.s32.totalorder %s83, 1
      %p269 = por %p267, %p268
      %p270 = scmp.ne.s32.totalorder %s261, %s262
      %p271 = scmp.eq.s32.totalorder %s83, 0
      %p272 = por %p270, %p271
      %p273 = scmp.ne.s32.totalorder %s261, %s262
      %p274 = scmp.eq.s32.totalorder %s84, 1
      %p275 = por %p273, %p274
      %p277 = scmp.ne.s32.totalorder %s262, %s276
      %p278 = scmp.eq.s32.totalorder %s84, 0
      %p279 = por %p277, %p278
      %s281 = sadd.s32 %s280, 1
      %p284 = scmp.eq.s32.totalorder %s78, 1
      %p285 = scmp.ne.s32.totalorder %s280, %s282
      %p286 = scmp.eq.s32.totalorder %s78, 0
      %p287 = por %p285, %p286
      %p288 = scmp.ne.s32.totalorder %s280, %s282
      %p289 = scmp.eq.s32.totalorder %s83, 1
      %p290 = por %p288, %p289
      %p291 = scmp.ne.s32.totalorder %s282, %s283
      %p292 = scmp.eq.s32.totalorder %s83, 0
      %p293 = por %p291, %p292
      %p294 = scmp.ne.s32.totalorder %s282, %s283
      %p295 = scmp.eq.s32.totalorder %s84, 1
      %p296 = por %p294, %p295
      %p298 = scmp.ne.s32.totalorder %s283, %s297
      %p299 = scmp.eq.s32.totalorder %s84, 0
      %p300 = por %p298, %p299
      %s302 = sadd.s32 %s301, 1
      %p305 = scmp.eq.s32.totalorder %s78, 1
      %p306 = scmp.ne.s32.totalorder %s301, %s303
      %p307 = scmp.eq.s32.totalorder %s78, 0
      %p308 = por %p306, %p307
      %p309 = scmp.ne.s32.totalorder %s301, %s303
      %p310 = scmp.eq.s32.totalorder %s83, 1
      %p311 = por %p309, %p310
      %p312 = scmp.ne.s32.totalorder %s303, %s304
      %p313 = scmp.eq.s32.totalorder %s83, 0
      %p314 = por %p312, %p313
      %p315 = scmp.ne.s32.totalorder %s303, %s304
      %p316 = scmp.eq.s32.totalorder %s84, 1
      %p317 = por %p315, %p316
      %p319 = scmp.ne.s32.totalorder %s304, %s318
      %p320 = scmp.eq.s32.totalorder %s84, 0
      %p321 = por %p319, %p320
      %s323 = sadd.s32 %s322, 1
      %p326 = scmp.eq.s32.totalorder %s78, 1
      %p327 = scmp.ne.s32.totalorder %s322, %s324
      %p328 = scmp.eq.s32.totalorder %s78, 0
      %p329 = por %p327, %p328
      %p330 = scmp.ne.s32.totalorder %s322, %s324
      %p331 = scmp.eq.s32.totalorder %s83, 1
      %p332 = por %p330, %p331
      %p333 = scmp.ne.s32.totalorder %s324, %s325
      %p334 = scmp.eq.s32.totalorder %s83, 0
      %p335 = por %p333, %p334
      %p336 = scmp.ne.s32.totalorder %s324, %s325
      %p337 = scmp.eq.s32.totalorder %s84, 1
      %p338 = por %p336, %p337
      %p340 = scmp.ne.s32.totalorder %s325, %s339
      %p341 = scmp.eq.s32.totalorder %s84, 0
      %p342 = por %p340, %p341
      %s344 = sadd.s32 %s343, 1
      %p347 = scmp.eq.s32.totalorder %s78, 1
      %p348 = scmp.ne.s32.totalorder %s343, %s345
      %p349 = scmp.eq.s32.totalorder %s78, 0
      %p350 = por %p348, %p349
      %p351 = scmp.ne.s32.totalorder %s343, %s345
      %p352 = scmp.eq.s32.totalorder %s83, 1
      %p353 = por %p351, %p352
      %p354 = scmp.ne.s32.totalorder %s345, %s346
      %p355 = scmp.eq.s32.totalorder %s83, 0
      %p356 = por %p354, %p355
      %p357 = scmp.ne.s32.totalorder %s345, %s346
      %p358 = scmp.eq.s32.totalorder %s84, 1
      %p359 = por %p357, %p358
      %p361 = scmp.ne.s32.totalorder %s346, %s360
      %p362 = scmp.eq.s32.totalorder %s84, 0
      %p363 = por %p361, %p362
      %s365 = sadd.s32 %s364, 1
      %p368 = scmp.eq.s32.totalorder %s78, 1
      %p369 = scmp.ne.s32.totalorder %s364, %s366
      %p370 = scmp.eq.s32.totalorder %s78, 0
      %p371 = por %p369, %p370
      %p372 = scmp.ne.s32.totalorder %s364, %s366
      %p373 = scmp.eq.s32.totalorder %s83, 1
      %p374 = por %p372, %p373
      %p375 = scmp.ne.s32.totalorder %s366, %s367
      %p376 = scmp.eq.s32.totalorder %s83, 0
      %p377 = por %p375, %p376
      %p378 = scmp.ne.s32.totalorder %s366, %s367
      %p379 = scmp.eq.s32.totalorder %s84, 1
      %p380 = por %p378, %p379
      %p382 = scmp.ne.s32.totalorder %s367, %s381
      %p383 = scmp.eq.s32.totalorder %s84, 0
      %p384 = por %p382, %p383
      %s386 = sadd.s32 %s385, 1
      %p389 = scmp.eq.s32.totalorder %s78, 1
      %p390 = scmp.ne.s32.totalorder %s385, %s387
      %p391 = scmp.eq.s32.totalorder %s78, 0
      %p392 = por %p390, %p391
      %p393 = scmp.ne.s32.totalorder %s385, %s387
      %p394 = scmp.eq.s32.totalorder %s83, 1
      %p395 = por %p393, %p394
      %p396 = scmp.ne.s32.totalorder %s387, %s388
      %p397 = scmp.eq.s32.totalorder %s83, 0
      %p398 = por %p396, %p397
      %p399 = scmp.ne.s32.totalorder %s387, %s388
      %p400 = scmp.eq.s32.totalorder %s84, 1
      %p401 = por %p399, %p400
      %p403 = scmp.ne.s32.totalorder %s388, %s402
      %p404 = scmp.eq.s32.totalorder %s84, 0
      %p405 = por %p403, %p404
      %s407 = sadd.s32 %s406, 1
      %p410 = scmp.eq.s32.totalorder %s78, 1
      %p411 = scmp.ne.s32.totalorder %s406, %s408
      %p412 = scmp.eq.s32.totalorder %s78, 0
      %p413 = por %p411, %p412
      %p414 = scmp.ne.s32.totalorder %s406, %s408
      %p415 = scmp.eq.s32.totalorder %s83, 1
      %p416 = por %p414, %p415
      %p417 = scmp.ne.s32.totalorder %s408, %s409
      %p418 = scmp.eq.s32.totalorder %s83, 0
      %p419 = por %p417, %p418
      %p420 = scmp.ne.s32.totalorder %s408, %s409
      %p421 = scmp.eq.s32.totalorder %s84, 1
      %p422 = por %p420, %p421
      %p424 = scmp.ne.s32.totalorder %s409, %s423
      %p425 = scmp.eq.s32.totalorder %s84, 0
      %p426 = por %p424, %p425
      %s428 = sadd.s32 %s427, 1
      %p431 = scmp.eq.s32.totalorder %s78, 1
      %p432 = scmp.ne.s32.totalorder %s427, %s429
      %p433 = scmp.eq.s32.totalorder %s78, 0
      %p434 = por %p432, %p433
      %p435 = scmp.ne.s32.totalorder %s427, %s429
      %p436 = scmp.eq.s32.totalorder %s83, 1
      %p437 = por %p435, %p436
      %p438 = scmp.ne.s32.totalorder %s429, %s430
      %p439 = scmp.eq.s32.totalorder %s83, 0
      %p440 = por %p438, %p439
      %p441 = scmp.ne.s32.totalorder %s429, %s430
      %p442 = scmp.eq.s32.totalorder %s84, 1
      %p443 = por %p441, %p442
      %p445 = scmp.ne.s32.totalorder %s430, %s444
      %p446 = scmp.eq.s32.totalorder %s84, 0
      %p447 = por %p445, %p446
      %s449 = sadd.s32 %s448, 1
      %p452 = scmp.eq.s32.totalorder %s78, 1
      %p453 = scmp.ne.s32.totalorder %s448, %s450
      %p454 = scmp.eq.s32.totalorder %s78, 0
      %p455 = por %p453, %p454
      %p456 = scmp.ne.s32.totalorder %s448, %s450
      %p457 = scmp.eq.s32.totalorder %s83, 1
      %p458 = por %p456, %p457
      %p459 = scmp.ne.s32.totalorder %s450, %s451
      %p460 = scmp.eq.s32.totalorder %s83, 0
      %p461 = por %p459, %p460
      %p462 = scmp.ne.s32.totalorder %s450, %s451
      %p463 = scmp.eq.s32.totalorder %s84, 1
      %p464 = por %p462, %p463
      %p466 = scmp.ne.s32.totalorder %s451, %s465
      %p467 = scmp.eq.s32.totalorder %s84, 0
      %p468 = por %p466, %p467
      %s470 = sadd.s32 %s469, 1
      %p473 = scmp.eq.s32.totalorder %s78, 1
      %p474 = scmp.ne.s32.totalorder %s469, %s471
      %p475 = scmp.eq.s32.totalorder %s78, 0
      %p476 = por %p474, %p475
      %p477 = scmp.ne.s32.totalorder %s469, %s471
      %p478 = scmp.eq.s32.totalorder %s83, 1
      %p479 = por %p477, %p478
      %p480 = scmp.ne.s32.totalorder %s471, %s472
      %p481 = scmp.eq.s32.totalorder %s83, 0
      %p482 = por %p480, %p481
      %p483 = scmp.ne.s32.totalorder %s471, %s472
      %p484 = scmp.eq.s32.totalorder %s84, 1
      %p485 = por %p483, %p484
      %p487 = scmp.ne.s32.totalorder %s472, %s486
      %p488 = scmp.eq.s32.totalorder %s84, 0
      %p489 = por %p487, %p488
      %s491 = sadd.s32 %s490, 1
      %p494 = scmp.eq.s32.totalorder %s78, 1
      %p495 = scmp.ne.s32.totalorder %s490, %s492
      %p496 = scmp.eq.s32.totalorder %s78, 0
      %p497 = por %p495, %p496
      %p498 = scmp.ne.s32.totalorder %s490, %s492
      %p499 = scmp.eq.s32.totalorder %s83, 1
      %p500 = por %p498, %p499
      %p501 = scmp.ne.s32.totalorder %s492, %s493
      %p502 = scmp.eq.s32.totalorder %s83, 0
      %p503 = por %p501, %p502
      %p504 = scmp.ne.s32.totalorder %s492, %s493
      %p505 = scmp.eq.s32.totalorder %s84, 1
      %p506 = por %p504, %p505
      %p508 = scmp.ne.s32.totalorder %s493, %s507
      %p509 = scmp.eq.s32.totalorder %s84, 0
      %p510 = por %p508, %p509
      %s512 = sadd.s32 %s511, 1
      %p515 = scmp.eq.s32.totalorder %s78, 1
      %p516 = scmp.ne.s32.totalorder %s511, %s513
      %p517 = scmp.eq.s32.totalorder %s78, 0
      %p518 = por %p516, %p517
      %p519 = scmp.ne.s32.totalorder %s511, %s513
      %p520 = scmp.eq.s32.totalorder %s83, 1
      %p521 = por %p519, %p520
      %p522 = scmp.ne.s32.totalorder %s513, %s514
      %p523 = scmp.eq.s32.totalorder %s83, 0
      %p524 = por %p522, %p523
      %p525 = scmp.ne.s32.totalorder %s513, %s514
      %p526 = scmp.eq.s32.totalorder %s84, 1
      %p527 = por %p525, %p526
      %p529 = scmp.ne.s32.totalorder %s514, %s528
      %p530 = scmp.eq.s32.totalorder %s84, 0
      %p531 = por %p529, %p530
      %s533 = sadd.s32 %s532, 1
      %p536 = scmp.eq.s32.totalorder %s78, 1
      %p537 = scmp.ne.s32.totalorder %s532, %s534
      %p538 = scmp.eq.s32.totalorder %s78, 0
      %p539 = por %p537, %p538
      %p540 = scmp.ne.s32.totalorder %s532, %s534
      %p541 = scmp.eq.s32.totalorder %s83, 1
      %p542 = por %p540, %p541
      %p543 = scmp.ne.s32.totalorder %s534, %s535
      %p544 = scmp.eq.s32.totalorder %s83, 0
      %p545 = por %p543, %p544
      %p546 = scmp.ne.s32.totalorder %s534, %s535
      %p547 = scmp.eq.s32.totalorder %s84, 1
      %p548 = por %p546, %p547
      %p550 = scmp.ne.s32.totalorder %s535, %s549
      %p551 = scmp.eq.s32.totalorder %s84, 0
      %p552 = por %p550, %p551
      %s554 = sadd.s32 %s553, 1
      %p557 = scmp.eq.s32.totalorder %s78, 1
      %p558 = scmp.ne.s32.totalorder %s553, %s555
      %p559 = scmp.eq.s32.totalorder %s78, 0
      %p560 = por %p558, %p559
      %p561 = scmp.ne.s32.totalorder %s553, %s555
      %p562 = scmp.eq.s32.totalorder %s83, 1
      %p563 = por %p561, %p562
      %p564 = scmp.ne.s32.totalorder %s555, %s556
      %p565 = scmp.eq.s32.totalorder %s83, 0
      %p566 = por %p564, %p565
      %p567 = scmp.ne.s32.totalorder %s555, %s556
      %p568 = scmp.eq.s32.totalorder %s84, 1
      %p569 = por %p567, %p568
      %p571 = scmp.ne.s32.totalorder %s556, %s570
      %p572 = scmp.eq.s32.totalorder %s84, 0
      %p573 = por %p571, %p572
      %s575 = sadd.s32 %s574, 1
      %p578 = scmp.eq.s32.totalorder %s78, 1
      %p579 = scmp.ne.s32.totalorder %s574, %s576
      %p580 = scmp.eq.s32.totalorder %s78, 0
      %p581 = por %p579, %p580
      %p582 = scmp.ne.s32.totalorder %s574, %s576
      %p583 = scmp.eq.s32.totalorder %s83, 1
      %p584 = por %p582, %p583
      %p585 = scmp.ne.s32.totalorder %s576, %s577
      %p586 = scmp.eq.s32.totalorder %s83, 0
      %p587 = por %p585, %p586
      %p588 = scmp.ne.s32.totalorder %s576, %s577
      %p589 = scmp.eq.s32.totalorder %s84, 1
      %p590 = por %p588, %p589
      %p592 = scmp.ne.s32.totalorder %s577, %s591
      %p593 = scmp.eq.s32.totalorder %s84, 0
      %p594 = por %p592, %p593
      %s596 = sadd.s32 %s595, 1
      %p599 = scmp.eq.s32.totalorder %s78, 1
      %p600 = scmp.ne.s32.totalorder %s595, %s597
      %p601 = scmp.eq.s32.totalorder %s78, 0
      %p602 = por %p600, %p601
      %p603 = scmp.ne.s32.totalorder %s595, %s597
      %p604 = scmp.eq.s32.totalorder %s83, 1
      %p605 = por %p603, %p604
      %p606 = scmp.ne.s32.totalorder %s597, %s598
      %p607 = scmp.eq.s32.totalorder %s83, 0
      %p608 = por %p606, %p607
      %p609 = scmp.ne.s32.totalorder %s597, %s598
      %p610 = scmp.eq.s32.totalorder %s84, 1
      %p611 = por %p609, %p610
      %p613 = scmp.ne.s32.totalorder %s598, %s612
      %p614 = scmp.eq.s32.totalorder %s84, 0
      %p615 = por %p613, %p614
      %s617 = sadd.s32 %s616, 1
      %p620 = scmp.eq.s32.totalorder %s78, 1
      %p621 = scmp.ne.s32.totalorder %s616, %s618
      %p622 = scmp.eq.s32.totalorder %s78, 0
      %p623 = por %p621, %p622
      %p624 = scmp.ne.s32.totalorder %s616, %s618
      %p625 = scmp.eq.s32.totalorder %s83, 1
      %p626 = por %p624, %p625
      %p627 = scmp.ne.s32.totalorder %s618, %s619
      %p628 = scmp.eq.s32.totalorder %s83, 0
      %p629 = por %p627, %p628
      %p630 = scmp.ne.s32.totalorder %s618, %s619
      %p631 = scmp.eq.s32.totalorder %s84, 1
      %p632 = por %p630, %p631
      %p634 = scmp.ne.s32.totalorder %s619, %s633
      %p635 = scmp.eq.s32.totalorder %s84, 0
      %p636 = por %p634, %p635
      %s638 = sadd.s32 %s637, 1
      %p641 = scmp.eq.s32.totalorder %s78, 1
      %p642 = scmp.ne.s32.totalorder %s637, %s639
      %p643 = scmp.eq.s32.totalorder %s78, 0
      %p644 = por %p642, %p643
      %p645 = scmp.ne.s32.totalorder %s637, %s639
      %p646 = scmp.eq.s32.totalorder %s83, 1
      %p647 = por %p645, %p646
      %p648 = scmp.ne.s32.totalorder %s639, %s640
      %p649 = scmp.eq.s32.totalorder %s83, 0
      %p650 = por %p648, %p649
      %p651 = scmp.ne.s32.totalorder %s639, %s640
      %p652 = scmp.eq.s32.totalorder %s84, 1
      %p653 = por %p651, %p652
      %p655 = scmp.ne.s32.totalorder %s640, %s654
      %p656 = scmp.eq.s32.totalorder %s84, 0
      %p657 = por %p655, %p656
      %s659 = sadd.s32 %s658, 1
      %p662 = scmp.eq.s32.totalorder %s78, 1
      %p663 = scmp.ne.s32.totalorder %s658, %s660
      %p664 = scmp.eq.s32.totalorder %s78, 0
      %p665 = por %p663, %p664
      %p666 = scmp.ne.s32.totalorder %s658, %s660
      %p667 = scmp.eq.s32.totalorder %s83, 1
      %p668 = por %p666, %p667
      %p669 = scmp.ne.s32.totalorder %s660, %s661
      %p670 = scmp.eq.s32.totalorder %s83, 0
      %p671 = por %p669, %p670
      %p672 = scmp.ne.s32.totalorder %s660, %s661
      %p673 = scmp.eq.s32.totalorder %s84, 1
      %p674 = por %p672, %p673
      %p676 = scmp.ne.s32.totalorder %s661, %s675
      %p677 = scmp.eq.s32.totalorder %s84, 0
      %p678 = por %p676, %p677
      %s680 = sadd.s32 %s679, 1
      %p683 = scmp.eq.s32.totalorder %s78, 1
      %p684 = scmp.ne.s32.totalorder %s679, %s681
      %p685 = scmp.eq.s32.totalorder %s78, 0
      %p686 = por %p684, %p685
      %p687 = scmp.ne.s32.totalorder %s679, %s681
      %p688 = scmp.eq.s32.totalorder %s83, 1
      %p689 = por %p687, %p688
      %p690 = scmp.ne.s32.totalorder %s681, %s682
      %p691 = scmp.eq.s32.totalorder %s83, 0
      %p692 = por %p690, %p691
      %p693 = scmp.ne.s32.totalorder %s681, %s682
      %p694 = scmp.eq.s32.totalorder %s84, 1
      %p695 = por %p693, %p694
      %p697 = scmp.ne.s32.totalorder %s682, %s696
      %p698 = scmp.eq.s32.totalorder %s84, 0
      %p699 = por %p697, %p698
      %s701 = sadd.s32 %s700, 1
      %p704 = scmp.eq.s32.totalorder %s78, 1
      %p705 = scmp.ne.s32.totalorder %s700, %s702
      %p706 = scmp.eq.s32.totalorder %s78, 0
      %p707 = por %p705, %p706
      %p708 = scmp.ne.s32.totalorder %s700, %s702
      %p709 = scmp.eq.s32.totalorder %s83, 1
      %p710 = por %p708, %p709
      %p711 = scmp.ne.s32.totalorder %s702, %s703
      %p712 = scmp.eq.s32.totalorder %s83, 0
      %p713 = por %p711, %p712
      %p714 = scmp.ne.s32.totalorder %s702, %s703
      %p715 = scmp.eq.s32.totalorder %s84, 1
      %p716 = por %p714, %p715
      %p718 = scmp.ne.s32.totalorder %s703, %s717
      %p719 = scmp.eq.s32.totalorder %s84, 0
      %p720 = por %p718, %p719
      %s722 = sadd.s32 %s721, 1
      %p725 = scmp.eq.s32.totalorder %s78, 1
      %p726 = scmp.ne.s32.totalorder %s721, %s723
      %p727 = scmp.eq.s32.totalorder %s78, 0
      %p728 = por %p726, %p727
      %p729 = scmp.ne.s32.totalorder %s721, %s723
      %p730 = scmp.eq.s32.totalorder %s83, 1
      %p731 = por %p729, %p730
      %p732 = scmp.ne.s32.totalorder %s723, %s724
      %p733 = scmp.eq.s32.totalorder %s83, 0
      %p734 = por %p732, %p733
      %p735 = scmp.ne.s32.totalorder %s723, %s724
      %p736 = scmp.eq.s32.totalorder %s84, 1
      %p737 = por %p735, %p736
      %p739 = scmp.ne.s32.totalorder %s724, %s738
      %p740 = scmp.eq.s32.totalorder %s84, 0
      %p741 = por %p739, %p740
      %s743 = sadd.s32 %s742, 1
      %p746 = scmp.eq.s32.totalorder %s78, 1
      %p747 = scmp.ne.s32.totalorder %s742, %s744
      %p748 = scmp.eq.s32.totalorder %s78, 0
      %p749 = por %p747, %p748
      %p750 = scmp.ne.s32.totalorder %s742, %s744
      %p751 = scmp.eq.s32.totalorder %s83, 1
      %p752 = por %p750, %p751
      %p753 = scmp.ne.s32.totalorder %s744, %s745
      %p754 = scmp.eq.s32.totalorder %s83, 0
      %p755 = por %p753, %p754
      %p756 = scmp.ne.s32.totalorder %s744, %s745
      %p757 = scmp.eq.s32.totalorder %s84, 1
      %p758 = por %p756, %p757
      %p760 = scmp.ne.s32.totalorder %s745, %s759
      %p761 = scmp.eq.s32.totalorder %s84, 0
      %p762 = por %p760, %p761
      %s764 = sadd.s32 %s763, 1
      %p767 = scmp.eq.s32.totalorder %s78, 1
      %p768 = scmp.ne.s32.totalorder %s763, %s765
      %p769 = scmp.eq.s32.totalorder %s78, 0
      %p770 = por %p768, %p769
      %p771 = scmp.ne.s32.totalorder %s763, %s765
      %p772 = scmp.eq.s32.totalorder %s83, 1
      %p773 = por %p771, %p772
      %p774 = scmp.ne.s32.totalorder %s765, %s766
      %p775 = scmp.eq.s32.totalorder %s83, 0
      %p776 = por %p774, %p775
      %p777 = scmp.ne.s32.totalorder %s765, %s766
      %p778 = scmp.eq.s32.totalorder %s84, 1
      %p779 = por %p777, %p778
      %p781 = scmp.ne.s32.totalorder %s766, %s780
      %p782 = scmp.eq.s32.totalorder %s84, 0
      %p783 = por %p781, %p782
      %s785 = sadd.s32 %s784, 1
      %p788 = scmp.eq.s32.totalorder %s78, 1
      %p789 = scmp.ne.s32.totalorder %s784, %s786
      %p790 = scmp.eq.s32.totalorder %s78, 0
      %p791 = por %p789, %p790
      %p792 = scmp.ne.s32.totalorder %s784, %s786
      %p793 = scmp.eq.s32.totalorder %s83, 1
      %p794 = por %p792, %p793
      %p795 = scmp.ne.s32.totalorder %s786, %s787
      %p796 = scmp.eq.s32.totalorder %s83, 0
      %p797 = por %p795, %p796
      %p798 = scmp.ne.s32.totalorder %s786, %s787
      %p799 = scmp.eq.s32.totalorder %s84, 1
      %p800 = por %p798, %p799
      %p802 = scmp.ne.s32.totalorder %s787, %s801
      %p803 = scmp.eq.s32.totalorder %s84, 0
      %p804 = por %p802, %p803
      %s805 = ssub.s32 %s78, %s85
      %p806 = scmp.eq.s32.totalorder %s805, 0
      %s808 = sadd.s32 %s807, 1
      %s809 = scalar_select %p806, %s807, %s808
      %p812 = pneg %p806
      %p813 = scmp.eq.s32.totalorder %s78, 1
      %p814 = por %p812, %p813
      %p815 = scmp.ne.s32.totalorder %s807, %s810
      %p816 = scmp.eq.s32.totalorder %s78, 0
      %p817 = por %p815, %p816
      %p818 = scmp.ne.s32.totalorder %s807, %s810
      %p819 = scmp.eq.s32.totalorder %s83, 1
      %p820 = por %p818, %p819
      %p821 = scmp.ne.s32.totalorder %s810, %s811
      %p822 = scmp.eq.s32.totalorder %s83, 0
      %p823 = por %p821, %p822
      %p824 = scmp.ne.s32.totalorder %s810, %s811
      %p825 = scmp.eq.s32.totalorder %s84, 1
      %p826 = por %p824, %p825
      %p828 = scmp.ne.s32.totalorder %s811, %s827
      %p829 = scmp.eq.s32.totalorder %s84, 0
      %p830 = por %p828, %p829
      %p831 = scmp.le.s32.totalorder 1, %s78
      %p832 = scmp.lt.s32.totalorder %s78, 3
      %p833 = pnand %p831, %p832
      %p834 = pneg %p833
      // Predicated region
      $region9: #{tpu_custom_call.1} parent=5 // pred_check
        _
      $region10: #{tpu_custom_call.1} parent=5 // pred_check_branch
        %836 = sbr.rel (%p833) target = $region12
      $region11: #{tpu_custom_call.1} parent=5 // pred_region
        %s837 = ssub.s32 %s78, 1
        // Predicated region
        $region13: #{tpu_custom_call.1} parent=11 // pred_check
          %p838 = pneg %p125
        $region14: #{tpu_custom_call.1} parent=11 // pred_check_branch
          %840 = sbr.rel (%p838) target = $region16
        $region15: #{tpu_custom_call.1} parent=11 // pred_region
          _
        $region16: #{tpu_custom_call.1} parent=11 // pred_fallthru
          _
        // Predicated region
        $region17: #{tpu_custom_call.1} parent=11 // pred_check
          %p841 = pneg %p146
        $region18: #{tpu_custom_call.1} parent=11 // pred_check_branch
          %843 = sbr.rel (%p841) target = $region20
        $region19: #{tpu_custom_call.1} parent=11 // pred_region
          _
        $region20: #{tpu_custom_call.1} parent=11 // pred_fallthru
          _
        // Predicated region
        $region21: #{tpu_custom_call.1} parent=11 // pred_check
          %p844 = pneg %p167
        $region22: #{tpu_custom_call.1} parent=11 // pred_check_branch
          %846 = sbr.rel (%p844) target = $region24
        $region23: #{tpu_custom_call.1} parent=11 // pred_region
          _
        $region24: #{tpu_custom_call.1} parent=11 // pred_fallthru
          _
        // Predicated region
        $region25: #{tpu_custom_call.1} parent=11 // pred_check
          %p847 = pneg %p188
        $region26: #{tpu_custom_call.1} parent=11 // pred_check_branch
          %849 = sbr.rel (%p847) target = $region28
        $region27: #{tpu_custom_call.1} parent=11 // pred_region
          _
        $region28: #{tpu_custom_call.1} parent=11 // pred_fallthru
          _
        // Predicated region
        $region29: #{tpu_custom_call.1} parent=11 // pred_check
          %p850 = pneg %p209
        $region30: #{tpu_custom_call.1} parent=11 // pred_check_branch
          %852 = sbr.rel (%p850) target = $region32
        $region31: #{tpu_custom_call.1} parent=11 // pred_region
          _
        $region32: #{tpu_custom_call.1} parent=11 // pred_fallthru
          _
        // Predicated region
        $region33: #{tpu_custom_call.1} parent=11 // pred_check
          %p853 = pneg %p230
        $region34: #{tpu_custom_call.1} parent=11 // pred_check_branch
          %855 = sbr.rel (%p853) target = $region36
        $region35: #{tpu_custom_call.1} parent=11 // pred_region
          _
        $region36: #{tpu_custom_call.1} parent=11 // pred_fallthru
          _
        // Predicated region
        $region37: #{tpu_custom_call.1} parent=11 // pred_check
          %p856 = pneg %p251
        $region38: #{tpu_custom_call.1} parent=11 // pred_check_branch
          %858 = sbr.rel (%p856) target = $region40
        $region39: #{tpu_custom_call.1} parent=11 // pred_region
          _
        $region40: #{tpu_custom_call.1} parent=11 // pred_fallthru
          _
        // Predicated region
        $region41: #{tpu_custom_call.1} parent=11 // pred_check
          %p859 = pneg %p272
        $region42: #{tpu_custom_call.1} parent=11 // pred_check_branch
          %861 = sbr.rel (%p859) target = $region44
        $region43: #{tpu_custom_call.1} parent=11 // pred_region
          _
        $region44: #{tpu_custom_call.1} parent=11 // pred_fallthru
          _
        // Predicated region
        $region45: #{tpu_custom_call.1} parent=11 // pred_check
          %p862 = pneg %p293
        $region46: #{tpu_custom_call.1} parent=11 // pred_check_branch
          %864 = sbr.rel (%p862) target = $region48
        $region47: #{tpu_custom_call.1} parent=11 // pred_region
          _
        $region48: #{tpu_custom_call.1} parent=11 // pred_fallthru
          _
        // Predicated region
        $region49: #{tpu_custom_call.1} parent=11 // pred_check
          %p865 = pneg %p314
        $region50: #{tpu_custom_call.1} parent=11 // pred_check_branch
          %867 = sbr.rel (%p865) target = $region52
        $region51: #{tpu_custom_call.1} parent=11 // pred_region
          _
        $region52: #{tpu_custom_call.1} parent=11 // pred_fallthru
          _
        // Predicated region
        $region53: #{tpu_custom_call.1} parent=11 // pred_check
          %p868 = pneg %p335
        $region54: #{tpu_custom_call.1} parent=11 // pred_check_branch
          %870 = sbr.rel (%p868) target = $region56
        $region55: #{tpu_custom_call.1} parent=11 // pred_region
          _
        $region56: #{tpu_custom_call.1} parent=11 // pred_fallthru
          _
        // Predicated region
        $region57: #{tpu_custom_call.1} parent=11 // pred_check
          %p871 = pneg %p356
        $region58: #{tpu_custom_call.1} parent=11 // pred_check_branch
          %873 = sbr.rel (%p871) target = $region60
        $region59: #{tpu_custom_call.1} parent=11 // pred_region
          _
        $region60: #{tpu_custom_call.1} parent=11 // pred_fallthru
          _
        // Predicated region
        $region61: #{tpu_custom_call.1} parent=11 // pred_check
          %p874 = pneg %p377
        $region62: #{tpu_custom_call.1} parent=11 // pred_check_branch
          %876 = sbr.rel (%p874) target = $region64
        $region63: #{tpu_custom_call.1} parent=11 // pred_region
          _
        $region64: #{tpu_custom_call.1} parent=11 // pred_fallthru
          _
        // Predicated region
        $region65: #{tpu_custom_call.1} parent=11 // pred_check
          %p877 = pneg %p398
        $region66: #{tpu_custom_call.1} parent=11 // pred_check_branch
          %879 = sbr.rel (%p877) target = $region68
        $region67: #{tpu_custom_call.1} parent=11 // pred_region
          _
        $region68: #{tpu_custom_call.1} parent=11 // pred_fallthru
          _
        // Predicated region
        $region69: #{tpu_custom_call.1} parent=11 // pred_check
          %p880 = pneg %p419
        $region70: #{tpu_custom_call.1} parent=11 // pred_check_branch
          %882 = sbr.rel (%p880) target = $region72
        $region71: #{tpu_custom_call.1} parent=11 // pred_region
          _
        $region72: #{tpu_custom_call.1} parent=11 // pred_fallthru
          _
        // Predicated region
        $region73: #{tpu_custom_call.1} parent=11 // pred_check
          %p883 = pneg %p440
        $region74: #{tpu_custom_call.1} parent=11 // pred_check_branch
          %885 = sbr.rel (%p883) target = $region76
        $region75: #{tpu_custom_call.1} parent=11 // pred_region
          _
        $region76: #{tpu_custom_call.1} parent=11 // pred_fallthru
          _
        // Predicated region
        $region77: #{tpu_custom_call.1} parent=11 // pred_check
          %p886 = pneg %p461
        $region78: #{tpu_custom_call.1} parent=11 // pred_check_branch
          %888 = sbr.rel (%p886) target = $region80
        $region79: #{tpu_custom_call.1} parent=11 // pred_region
          _
        $region80: #{tpu_custom_call.1} parent=11 // pred_fallthru
          _
        // Predicated region
        $region81: #{tpu_custom_call.1} parent=11 // pred_check
          %p889 = pneg %p482
        $region82: #{tpu_custom_call.1} parent=11 // pred_check_branch
          %891 = sbr.rel (%p889) target = $region84
        $region83: #{tpu_custom_call.1} parent=11 // pred_region
          _
        $region84: #{tpu_custom_call.1} parent=11 // pred_fallthru
          _
        // Predicated region
        $region85: #{tpu_custom_call.1} parent=11 // pred_check
          %p892 = pneg %p503
        $region86: #{tpu_custom_call.1} parent=11 // pred_check_branch
          %894 = sbr.rel (%p892) target = $region88
        $region87: #{tpu_custom_call.1} parent=11 // pred_region
          _
        $region88: #{tpu_custom_call.1} parent=11 // pred_fallthru
          _
        // Predicated region
        $region89: #{tpu_custom_call.1} parent=11 // pred_check
          %p895 = pneg %p524
        $region90: #{tpu_custom_call.1} parent=11 // pred_check_branch
          %897 = sbr.rel (%p895) target = $region92
        $region91: #{tpu_custom_call.1} parent=11 // pred_region
          _
        $region92: #{tpu_custom_call.1} parent=11 // pred_fallthru
          _
        // Predicated region
        $region93: #{tpu_custom_call.1} parent=11 // pred_check
          %p898 = pneg %p545
        $region94: #{tpu_custom_call.1} parent=11 // pred_check_branch
          %900 = sbr.rel (%p898) target = $region96
        $region95: #{tpu_custom_call.1} parent=11 // pred_region
          _
        $region96: #{tpu_custom_call.1} parent=11 // pred_fallthru
          _
        // Predicated region
        $region97: #{tpu_custom_call.1} parent=11 // pred_check
          %p901 = pneg %p566
        $region98: #{tpu_custom_call.1} parent=11 // pred_check_branch
          %903 = sbr.rel (%p901) target = $region100
        $region99: #{tpu_custom_call.1} parent=11 // pred_region
          _
        $region100: #{tpu_custom_call.1} parent=11 // pred_fallthru
          _
        // Predicated region
        $region101: #{tpu_custom_call.1} parent=11 // pred_check
          %p904 = pneg %p587
        $region102: #{tpu_custom_call.1} parent=11 // pred_check_branch
          %906 = sbr.rel (%p904) target = $region104
        $region103: #{tpu_custom_call.1} parent=11 // pred_region
          _
        $region104: #{tpu_custom_call.1} parent=11 // pred_fallthru
          _
        // Predicated region
        $region105: #{tpu_custom_call.1} parent=11 // pred_check
          %p907 = pneg %p608
        $region106: #{tpu_custom_call.1} parent=11 // pred_check_branch
          %909 = sbr.rel (%p907) target = $region108
        $region107: #{tpu_custom_call.1} parent=11 // pred_region
          _
        $region108: #{tpu_custom_call.1} parent=11 // pred_fallthru
          _
        // Predicated region
        $region109: #{tpu_custom_call.1} parent=11 // pred_check
          %p910 = pneg %p629
        $region110: #{tpu_custom_call.1} parent=11 // pred_check_branch
          %912 = sbr.rel (%p910) target = $region112
        $region111: #{tpu_custom_call.1} parent=11 // pred_region
          _
        $region112: #{tpu_custom_call.1} parent=11 // pred_fallthru
          _
        // Predicated region
        $region113: #{tpu_custom_call.1} parent=11 // pred_check
          %p913 = pneg %p650
        $region114: #{tpu_custom_call.1} parent=11 // pred_check_branch
          %915 = sbr.rel (%p913) target = $region116
        $region115: #{tpu_custom_call.1} parent=11 // pred_region
          _
        $region116: #{tpu_custom_call.1} parent=11 // pred_fallthru
          _
        // Predicated region
        $region117: #{tpu_custom_call.1} parent=11 // pred_check
          %p916 = pneg %p671
        $region118: #{tpu_custom_call.1} parent=11 // pred_check_branch
          %918 = sbr.rel (%p916) target = $region120
        $region119: #{tpu_custom_call.1} parent=11 // pred_region
          _
        $region120: #{tpu_custom_call.1} parent=11 // pred_fallthru
          _
        // Predicated region
        $region121: #{tpu_custom_call.1} parent=11 // pred_check
          %p919 = pneg %p692
        $region122: #{tpu_custom_call.1} parent=11 // pred_check_branch
          %921 = sbr.rel (%p919) target = $region124
        $region123: #{tpu_custom_call.1} parent=11 // pred_region
          _
        $region124: #{tpu_custom_call.1} parent=11 // pred_fallthru
          _
        // Predicated region
        $region125: #{tpu_custom_call.1} parent=11 // pred_check
          %p922 = pneg %p713
        $region126: #{tpu_custom_call.1} parent=11 // pred_check_branch
          %924 = sbr.rel (%p922) target = $region128
        $region127: #{tpu_custom_call.1} parent=11 // pred_region
          _
        $region128: #{tpu_custom_call.1} parent=11 // pred_fallthru
          _
        // Predicated region
        $region129: #{tpu_custom_call.1} parent=11 // pred_check
          %p925 = pneg %p734
        $region130: #{tpu_custom_call.1} parent=11 // pred_check_branch
          %927 = sbr.rel (%p925) target = $region132
        $region131: #{tpu_custom_call.1} parent=11 // pred_region
          _
        $region132: #{tpu_custom_call.1} parent=11 // pred_fallthru
          _
        // Predicated region
        $region133: #{tpu_custom_call.1} parent=11 // pred_check
          %p928 = pneg %p755
        $region134: #{tpu_custom_call.1} parent=11 // pred_check_branch
          %930 = sbr.rel (%p928) target = $region136
        $region135: #{tpu_custom_call.1} parent=11 // pred_region
          _
        $region136: #{tpu_custom_call.1} parent=11 // pred_fallthru
          _
        // Predicated region
        $region137: #{tpu_custom_call.1} parent=11 // pred_check
          %p931 = pneg %p776
        $region138: #{tpu_custom_call.1} parent=11 // pred_check_branch
          %933 = sbr.rel (%p931) target = $region140
        $region139: #{tpu_custom_call.1} parent=11 // pred_region
          _
        $region140: #{tpu_custom_call.1} parent=11 // pred_fallthru
          _
        // Predicated region
        $region141: #{tpu_custom_call.1} parent=11 // pred_check
          %p934 = pneg %p797
        $region142: #{tpu_custom_call.1} parent=11 // pred_check_branch
          %936 = sbr.rel (%p934) target = $region144
        $region143: #{tpu_custom_call.1} parent=11 // pred_region
          _
        $region144: #{tpu_custom_call.1} parent=11 // pred_fallthru
          _
      $region12: #{tpu_custom_call.1} parent=5 // pred_fallthru
        _
      %p937 = scmp.lt.s32.totalorder %s78, 2
      // Predicated region
      $region145: #{tpu_custom_call.1} parent=5 // pred_check
        %p938 = pneg %p937
      $region146: #{tpu_custom_call.1} parent=5 // pred_check_branch
        %940 = sbr.rel (%p938) target = $region148
      $region147: #{tpu_custom_call.1} parent=5 // pred_region
        // Predicated region
        $region149: #{tpu_custom_call.1} parent=147 // pred_check
          %p941 = pneg %p98
        $region150: #{tpu_custom_call.1} parent=147 // pred_check_branch
          %943 = sbr.rel (%p941) target = $region152
        $region151: #{tpu_custom_call.1} parent=147 // pred_region
          %p944 = scmp.lt.s32.totalorder %s78, 1
          %s945 = scalar_select %p944, %s78, 1
          %s946 = smul.addr %s945, 2
          %s947 = smul.addr %s946, 8
          %s948 = scalar_lea.vmem %s1, %s947
        $region152: #{tpu_custom_call.1} parent=147 // pred_fallthru
          _
      $region148: #{tpu_custom_call.1} parent=5 // pred_fallthru
        _
      %p949 = scmp.le.s32.totalorder 1, %s78
      %p950 = scmp.lt.s32.totalorder %s78, 3
      %p951 = pnand %p949, %p950
      %p952 = pneg %p951
      // Predicated region
      $region153: #{tpu_custom_call.1} parent=5 // pred_check
        _
      $region154: #{tpu_custom_call.1} parent=5 // pred_check_branch
        %954 = sbr.rel (%p951) target = $region156
      $region155: #{tpu_custom_call.1} parent=5 // pred_region
        %s955 = ssub.s32 %s78, 1
        %p956 = scmp.lt.s32.totalorder %s83, 1
        %s957 = scalar_select %p956, %s83, 1
        %s958 = smul.addr %s957, 2
        %s959 = smul.addr %s958, 8
        %s960 = scalar_lea.vmem %s1, %s959
        %p961 = pneg %p104
        %p962 = pneg %p101
        %p963 = pneg %p125
        %p964 = pneg %p122
        %p965 = pneg %p146
        %p966 = pneg %p143
        %p967 = pneg %p167
        %p968 = pneg %p164
        %p969 = pneg %p188
        %p970 = pneg %p185
        %p971 = pneg %p209
        %p972 = pneg %p206
        %p973 = pneg %p230
        %p974 = pneg %p227
        %p975 = pneg %p251
        %p976 = pneg %p248
        %p977 = pneg %p272
        %p978 = pneg %p269
        %p979 = pneg %p293
        %p980 = pneg %p290
        %p981 = pneg %p314
        %p982 = pneg %p311
        %p983 = pneg %p335
        %p984 = pneg %p332
        %p985 = pneg %p356
        %p986 = pneg %p353
        %p987 = pneg %p377
        %p988 = pneg %p374
        %p989 = pneg %p398
        %p990 = pneg %p395
        %p991 = pneg %p419
        %p992 = pneg %p416
        %p993 = pneg %p440
        %p994 = pneg %p437
        %p995 = pneg %p461
        %p996 = pneg %p458
        %p997 = pneg %p482
        %p998 = pneg %p479
        %p999 = pneg %p503
        %p1000 = pneg %p500
        %p1001 = pneg %p524
        %p1002 = pneg %p521
        %p1003 = pneg %p545
        %p1004 = pneg %p542
        %p1005 = pneg %p566
        %p1006 = pneg %p563
        %p1007 = pneg %p587
        %p1008 = pneg %p584
        %p1009 = pneg %p608
        %p1010 = pneg %p605
        %p1011 = pneg %p629
        %p1012 = pneg %p626
        %p1013 = pneg %p650
        %p1014 = pneg %p647
        %p1015 = pneg %p671
        %p1016 = pneg %p668
        %p1017 = pneg %p692
        %p1018 = pneg %p689
        %p1019 = pneg %p713
        %p1020 = pneg %p710
        %p1021 = pneg %p734
        %p1022 = pneg %p731
        %p1023 = pneg %p755
        %p1024 = pneg %p752
        %p1025 = pneg %p776
        %p1026 = pneg %p773
        %p1027 = pneg %p797
        %p1028 = pneg %p794
        %p1029 = pneg %p823
        %p1030 = pneg %p820
        %s1031 = sand.u32 %s810, 1
        %s1032 = scalar_lea.sflag [#allocation5], %s1031
        %s1033 = sand.u32 %s810, 1
        %s1034 = scalar_lea.vmem [#allocation4], %s1033
        %p1035 = scmp.lt.s32.totalorder %s83, 1
        %s1036 = scalar_select %p1035, %s83, 1
        %s1037 = smul.addr %s1036, 2
        %s1038 = smul.addr %s1037, 8
        %s1039 = scalar_lea.vmem %s1, %s1038
        %v1040 = vld [vmem:[%s3] sm:$0xf]
        %v1041 = vld [vmem:[%s5] sm:$0x1]
        %v1042 = vld [vmem:[%s7] sm:$0x1]
        %v1043 = vld [vmem:[%s9] sm:$0x1]
        %v1044 = vld [vmem:[%s1039] sm:$0xff]
        %v1045 = vld [vmem:[%s1039 + $0x8] sm:$0xff]
        %v1047 = vperm.slane %v1041, 0
        %vm1049 = vcmask 31744
        %v1051 = vsel %vm1049, %v1044, 0
        %v1054 = vsel %vm1049, %v1045, 0
        %vm1056 = vcmask 1043456
        %v1058 = vsel %vm1056, %v1040, 0
        %1060 = vmatpush.msra.mxu0 0.0
        %1061 = vmatpush.msra.mxu0 0.0
        %1062 = vmatpush.msra.mxu0 0.0
        %1063 = vmatpush.msra.mxu0 0.0
        %1064 = vmatpush.msra.mxu0 0.0
        %1065 = vmatpush.msra.mxu0 0.0
        %1066 = vmatpush.msra.mxu0 0.0
        %1067 = vmatpush.msra.mxu0 0.0
        %1068 = vmatpush.msra.mxu0 0.0
        %1069 = vmatpush.msra.mxu0 0.0
        %1070 = vmatpush.msra.mxu0 0.0
        %1071 = vmatpush.msra.mxu0 0.0
        %1072 = vmatpush.msra.mxu0 0.0
        %1073 = vmatpush.msra.mxu0 0.0
        %1074 = vmatpush.msra.mxu0 0.0
        %1075 = vmatpush.msra.mxu0 %v1058
        %1076 = vmatmul.f32.gmra.mxu0 %v1051
        %v1077 = vpop.f32.mrf.mxu0
        %v1078 = vadd.f32 %v1047, %v1077
        %1079 = vmatmul.f32.gmra.mxu0 %v1054
        %v1080 = vpop.f32.mrf.mxu0
        %v1081 = vadd.f32 %v1047, %v1080
        %1082 = vdwg.mxu0
        %vm1083 = vcmask 130048
        %v1084 = vsel %vm1083, %v1078, 0.0
        %1085 = vadd.xlane.f32.xlu0 %v1084
        %v1086 = vpop.xlane.xlu0 %1085
        %v1087 = vsel %vm1083, %v1081, 0.0
        %1088 = vadd.xlane.f32.xlu0 %v1087
        %v1089 = vpop.xlane.xlu0 %1088
        %v1090 = vrcp.pop 16.0
        %v1091 = vmul.f32 16.0, %v1090
        %v1092 = vsub.f32 1.0, %v1091
        %v1093 = vmul.f32 %v1090, %v1092
        %v1094 = vadd.f32 %v1090, %v1093
        %vm1095 = vweird.f32 %v1090
        %v1096 = vsel %vm1095, %v1090, %v1094
        %v1097 = vmul.f32 %v1086, %v1096
        %v1098 = vmul.f32 %v1089, %v1096
        %v1099 = vsub.f32 %v1078, %v1097
        %v1100 = vsub.f32 %v1081, %v1098
        %v1101 = vmul.f32 %v1099, %v1099
        %v1102 = vmul.f32 %v1100, %v1100
        %v1103 = vsel %vm1083, %v1101, 0.0
        %1104 = vadd.xlane.f32.xlu0 %v1103
        %v1105 = vpop.xlane.xlu0 %1104
        %v1106 = vsel %vm1083, %v1102, 0.0
        %1107 = vadd.xlane.f32.xlu0 %v1106
        %v1108 = vpop.xlane.xlu0 %1107
        %v1109 = vmul.f32 %v1105, %v1096
        %v1110 = vmul.f32 %v1108, %v1096
        %v1111 = vadd.f32 %v1109, 1e-06
        %v1112 = vadd.f32 %v1110, 1e-06
        %v1113 = vrsqrt.pop %v1111
        %v1114 = vmul.f32 %v1113, %v1111
        %v1115 = vmul.f32 %v1114, %v1113
        %v1116 = vmul.f32 0.5, %v1115
        %v1117 = vsub.f32 1.5, %v1116
        %v1118 = vmul.f32 %v1113, %v1117
        %vm1119 = vweird.f32 %v1111
        %vm1120 = vweird.f32 %v1113
        %vm1121 = vmor %vm1119, %vm1120
        %v1122 = vsel %vm1121, %v1113, %v1118
        %v1123 = vrsqrt.pop %v1112
        %v1124 = vmul.f32 %v1123, %v1112
        %v1125 = vmul.f32 %v1124, %v1123
        %v1126 = vmul.f32 0.5, %v1125
        %v1127 = vsub.f32 1.5, %v1126
        %v1128 = vmul.f32 %v1123, %v1127
        %vm1129 = vweird.f32 %v1112
        %vm1130 = vweird.f32 %v1123
        %vm1131 = vmor %vm1129, %vm1130
        %v1132 = vsel %vm1131, %v1123, %v1128
        %v1133 = vmul.f32 %v1099, %v1122
        %v1134 = vmul.f32 %v1100, %v1132
        %v1136 = vperm.slane %v1042, 0
        %v1138 = vmul.f32 %v1133, %v1136
        %v1139 = vmul.f32 %v1134, %v1136
        %v1141 = vperm.slane %v1043, 0
        %v1143 = vadd.f32 %v1138, %v1141
        %v1144 = vadd.f32 %v1139, %v1141
        %v1145 = vld [vmem:[%s11] sm:$0x7f]
        %v1146 = vld [vmem:[%s13] sm:$0x1]
        %v1147 = vld [vmem:[%s15] sm:$0x1]
        %v1148 = vld [vmem:[%s17] sm:$0x1]
        %v1149 = vld [vmem:[%s19] sm:$0xff]
        %v1150 = vld [vmem:[%s19 + $0x8] sm:$0xff]
        %v1151 = vld [vmem:[%s21] sm:$0x1]
        %v1152 = vld [vmem:[%s23] sm:$0xff]
        %v1153 = vld [vmem:[%s23 + $0x8] sm:$0xff]
        %v1154 = vld [vmem:[%s23 + $0x10] sm:$0xff]
        %v1155 = vld [vmem:[%s23 + $0x18] sm:$0xff]
        %v1156 = vld [vmem:[%s23 + $0x20] sm:$0xff]
        %v1157 = vld [vmem:[%s23 + $0x28] sm:$0xff]
        %v1158 = vld [vmem:[%s23 + $0x30] sm:$0xff]
        %v1159 = vld [vmem:[%s23 + $0x38] sm:$0xff]
        %v1160 = vld [vmem:[%s25] sm:$0x1]
        %v1161 = vld [vmem:[%s27] sm:$0x1]
        %1162 = vst.msk [vmem:[#allocation2] sm:$0xff] %vm1083, 0.0
        %1163 = vst.msk [vmem:[#allocation2 + $0x8] sm:$0xff] %vm1083, 0.0
        %vm1164 = vcmask 128000
        %1165 = vst.msk [vmem:[#allocation2 + $0x10] sm:$0x3f] %vm1164, 0.0
        %1166 = vst.msk [vmem:[#allocation2 + $0x3] sm:$0xff] %vm1083, %v1143
        %1167 = vst.msk [vmem:[#allocation2 + $0xb] sm:$0xff] %vm1083, %v1144
        %v1168 = vld [vmem:[#allocation2] sm:$0xff]
        %v1169 = vld [vmem:[#allocation2 + $0x8] sm:$0xff]
        %v1170 = vperm.slane %v1145, 0
        %v1171 = vmul.f32 %v1168, %v1170
        %v1172 = vmul.f32 %v1169, %v1170
        %v1173 = vld [vmem:[#allocation2 + $0x1] sm:$0xff]
        %v1174 = vld [vmem:[#allocation2 + $0x9] sm:$0xff]
        %v1175 = vperm.slane %v1145, 1
        %v1176 = vmul.f32 %v1173, %v1175
        %v1177 = vmul.f32 %v1174, %v1175
        %v1178 = vadd.f32 %v1171, %v1176
        %v1179 = vadd.f32 %v1172, %v1177
        %v1180 = vld [vmem:[#allocation2 + $0x2] sm:$0xff]
        %v1181 = vld [vmem:[#allocation2 + $0xa] sm:$0xff]
        %v1182 = vperm.slane %v1145, 2
        %v1183 = vmul.f32 %v1180, %v1182
        %v1184 = vmul.f32 %v1181, %v1182
        %v1185 = vadd.f32 %v1178, %v1183
        %v1186 = vadd.f32 %v1179, %v1184
        %v1187 = vld [vmem:[#allocation2 + $0x3] sm:$0xff]
        %v1188 = vld [vmem:[#allocation2 + $0xb] sm:$0xff]
        %v1189 = vperm.slane %v1145, 3
        %v1190 = vmul.f32 %v1187, %v1189
        %v1191 = vmul.f32 %v1188, %v1189
        %v1192 = vadd.f32 %v1185, %v1190
        %v1193 = vadd.f32 %v1186, %v1191
        %v1194 = vld [vmem:[#allocation2 + $0x4] sm:$0xff]
        %v1195 = vld [vmem:[#allocation2 + $0xc] sm:$0xff]
        %v1196 = vperm.slane %v1145, 4
        %v1197 = vmul.f32 %v1194, %v1196
        %v1198 = vmul.f32 %v1195, %v1196
        %v1199 = vadd.f32 %v1192, %v1197
        %v1200 = vadd.f32 %v1193, %v1198
        %v1201 = vld [vmem:[#allocation2 + $0x5] sm:$0xff]
        %v1202 = vld [vmem:[#allocation2 + $0xd] sm:$0xff]
        %v1203 = vperm.slane %v1145, 5
        %v1204 = vmul.f32 %v1201, %v1203
        %v1205 = vmul.f32 %v1202, %v1203
        %v1206 = vadd.f32 %v1199, %v1204
        %v1207 = vadd.f32 %v1200, %v1205
        %v1208 = vld [vmem:[#allocation2 + $0x6] sm:$0xff]
        %v1209 = vld [vmem:[#allocation2 + $0xe] sm:$0xff]
        %v1210 = vperm.slane %v1145, 6
        %v1211 = vmul.f32 %v1208, %v1210
        %v1212 = vmul.f32 %v1209, %v1210
        %v1213 = vadd.f32 %v1206, %v1211
        %v1214 = vadd.f32 %v1207, %v1212
        %v1216 = vperm.slane %v1146, 0
        %v1218 = vadd.f32 %v1213, %v1216
        %v1219 = vadd.f32 %v1214, %v1216
        %v1220 = vsel %vm1083, %v1218, 0.0
        %1221 = vadd.xlane.f32.xlu0 %v1220
        %v1222 = vpop.xlane.xlu0 %1221
        %v1223 = vsel %vm1083, %v1219, 0.0
        %1224 = vadd.xlane.f32.xlu0 %v1223
        %v1225 = vpop.xlane.xlu0 %1224
        %v1226 = vmul.f32 %v1222, %v1096
        %v1227 = vmul.f32 %v1225, %v1096
        %v1228 = vsub.f32 %v1218, %v1226
        %v1229 = vsub.f32 %v1219, %v1227
        %v1230 = vmul.f32 %v1228, %v1228
        %v1231 = vmul.f32 %v1229, %v1229
        %v1232 = vsel %vm1083, %v1230, 0.0
        %1233 = vadd.xlane.f32.xlu0 %v1232
        %v1234 = vpop.xlane.xlu0 %1233
        %v1235 = vsel %vm1083, %v1231, 0.0
        %1236 = vadd.xlane.f32.xlu0 %v1235
        %v1237 = vpop.xlane.xlu0 %1236
        %v1238 = vmul.f32 %v1234, %v1096
        %v1239 = vmul.f32 %v1237, %v1096
        %v1240 = vadd.f32 %v1238, 1e-06
        %v1241 = vadd.f32 %v1239, 1e-06
        %v1242 = vrsqrt.pop %v1240
        %v1243 = vmul.f32 %v1242, %v1240
        %v1244 = vmul.f32 %v1243, %v1242
        %v1245 = vmul.f32 0.5, %v1244
        %v1246 = vsub.f32 1.5, %v1245
        %v1247 = vmul.f32 %v1242, %v1246
        %vm1248 = vweird.f32 %v1240
        %vm1249 = vweird.f32 %v1242
        %vm1250 = vmor %vm1248, %vm1249
        %v1251 = vsel %vm1250, %v1242, %v1247
        %v1252 = vrsqrt.pop %v1241
        %v1253 = vmul.f32 %v1252, %v1241
        %v1254 = vmul.f32 %v1253, %v1252
        %v1255 = vmul.f32 0.5, %v1254
        %v1256 = vsub.f32 1.5, %v1255
        %v1257 = vmul.f32 %v1252, %v1256
        %vm1258 = vweird.f32 %v1241
        %vm1259 = vweird.f32 %v1252
        %vm1260 = vmor %vm1258, %vm1259
        %v1261 = vsel %vm1260, %v1252, %v1257
        %v1262 = vmul.f32 %v1228, %v1251
        %v1263 = vmul.f32 %v1229, %v1261
        %v1265 = vperm.slane %v1147, 0
        %v1267 = vmul.f32 %v1262, %v1265
        %v1268 = vmul.f32 %v1263, %v1265
        %v1270 = vperm.slane %v1148, 0
        %v1272 = vadd.f32 %v1267, %v1270
        %v1273 = vadd.f32 %v1268, %v1270
        %v1275 = vperm.slane %v1151, 0
        %v1278 = vsel %vm1083, %v1272, 0
        %v1281 = vsel %vm1083, %v1273, 0
        %1283 = vmatpush.msra.mxu0 0.0
        %1284 = vmatpush.msra.mxu0 0.0
        %1285 = vmatpush.msra.mxu0 0.0
        %1286 = vmatpush.msra.mxu0 0.0
        %1287 = vmatpush.msra.mxu0 0.0
        %1288 = vmatpush.msra.mxu0 0.0
        %1289 = vmatpush.msra.mxu0 0.0
        %1290 = vmatpush.msra.mxu0 0.0
        %1291 = vmatpush.msra.mxu0 0.0
        %1292 = vmatpush.msra.mxu0 0.0
        %1293 = vmatpush.msra.mxu0 0.0
        %1294 = vmatpush.msra.mxu0 0.0
        %1295 = vmatpush.msra.mxu0 0.0
        %1296 = vmatpush.msra.mxu0 0.0
        %1297 = vmatpush.msra.mxu0 %v1150
        %1298 = vmatpush.msra.mxu0 %v1149
        %1299 = vmatmul.f32.gmra.mxu0 %v1278
        %v1300 = vpop.f32.mrf.mxu0
        %v1301 = vadd.f32 %v1275, %v1300
        %1302 = vmatmul.f32.gmra.mxu0 %v1281
        %v1303 = vpop.f32.mrf.mxu0
        %v1304 = vadd.f32 %v1275, %v1303
        %1305 = vdwg.mxu0
        %v1306 = vmul.f32 %v1301, %v1301
        %v1307 = vmul.f32 %v1304, %v1304
        %v1308 = vmul.f32 %v1301, %v1306
        %v1309 = vmul.f32 %v1304, %v1307
        %v1310 = vmul.f32 %v1308, 0.044715
        %v1311 = vmul.f32 %v1309, 0.044715
        %v1312 = vadd.f32 %v1301, %v1310
        %v1313 = vadd.f32 %v1304, %v1311
        %v1314 = vmul.f32 %v1312, 0.7978846
        %v1315 = vmul.f32 %v1313, 0.7978846
        %v1316 = vtanh.pop %v1314
        %v1317 = vtanh.pop %v1315
        %v1318 = vadd.f32 %v1316, 1.0
        %v1319 = vadd.f32 %v1317, 1.0
        %v1320 = vmul.f32 %v1318, 0.5
        %v1321 = vmul.f32 %v1319, 0.5
        %v1322 = vmul.f32 %v1301, %v1320
        %v1323 = vmul.f32 %v1304, %v1321
        %v1325 = vperm.slane %v1160, 0
        %vm1327 = vcmask 523264
        %v1329 = vsel %vm1327, %v1322, 0
        %v1332 = vsel %vm1327, %v1323, 0
        %1334 = vmatpush.msra.mxu0 0.0
        %1335 = vmatpush.msra.mxu0 0.0
        %1336 = vmatpush.msra.mxu0 0.0
        %1337 = vmatpush.msra.mxu0 0.0
        %1338 = vmatpush.msra.mxu0 0.0
        %1339 = vmatpush.msra.mxu0 0.0
        %1340 = vmatpush.msra.mxu0 0.0
        %1341 = vmatpush.msra.mxu0 0.0
        %1342 = vmatpush.msra.mxu0 %v1159
        %1343 = vmatpush.msra.mxu0 %v1158
        %1344 = vmatpush.msra.mxu0 %v1157
        %1345 = vmatpush.msra.mxu0 %v1156
        %1346 = vmatpush.msra.mxu0 %v1155
        %1347 = vmatpush.msra.mxu0 %v1154
        %1348 = vmatpush.msra.mxu0 %v1153
        %1349 = vmatpush.msra.mxu0 %v1152
        %1350 = vmatmul.f32.gmra.mxu0 %v1329
        %v1351 = vpop.f32.mrf.mxu0
        %v1352 = vadd.f32 %v1325, %v1351
        %1353 = vmatmul.f32.gmra.mxu0 %v1332
        %v1354 = vpop.f32.mrf.mxu0
        %v1355 = vadd.f32 %v1325, %v1354
        %1356 = vdwg.mxu0
        %v1358 = vperm.slane %v1161, 0
        %v1360 = vmul.f32 %v1352, %v1358
        %v1361 = vmul.f32 %v1355, %v1358
        %v1362 = vadd.f32 %v1143, %v1360
        %v1363 = vadd.f32 %v1144, %v1361
        %v1364 = vld [vmem:[%s29] sm:$0x1]
        %v1365 = vld [vmem:[%s31] sm:$0x1]
        %v1366 = vld [vmem:[%s33] sm:$0xff]
        %v1367 = vld [vmem:[%s35] sm:$0xff]
        %v1368 = vld [vmem:[%s37] sm:$0xff]
        %v1369 = vld [vmem:[%s37 + $0x8] sm:$0xff]
        %v1370 = vld [vmem:[%s39] sm:$0xff]
        %v1371 = vld [vmem:[%s39 + $0x8] sm:$0xff]
        %v1372 = vld [vmem:[%s41] sm:$0x1]
        %v1373 = vsel %vm1083, %v1362, 0.0
        %1374 = vadd.xlane.f32.xlu0 %v1373
        %v1375 = vpop.xlane.xlu0 %1374
        %v1376 = vsel %vm1083, %v1363, 0.0
        %1377 = vadd.xlane.f32.xlu0 %v1376
        %v1378 = vpop.xlane.xlu0 %1377
        %v1379 = vmul.f32 %v1375, %v1096
        %v1380 = vmul.f32 %v1378, %v1096
        %v1381 = vsub.f32 %v1362, %v1379
        %v1382 = vsub.f32 %v1363, %v1380
        %v1383 = vmul.f32 %v1381, %v1381
        %v1384 = vmul.f32 %v1382, %v1382
        %v1385 = vsel %vm1083, %v1383, 0.0
        %1386 = vadd.xlane.f32.xlu0 %v1385
        %v1387 = vpop.xlane.xlu0 %1386
        %v1388 = vsel %vm1083, %v1384, 0.0
        %1389 = vadd.xlane.f32.xlu0 %v1388
        %v1390 = vpop.xlane.xlu0 %1389
        %v1391 = vmul.f32 %v1387, %v1096
        %v1392 = vmul.f32 %v1390, %v1096
        %v1393 = vadd.f32 %v1391, 1e-06
        %v1394 = vadd.f32 %v1392, 1e-06
        %v1395 = vrsqrt.pop %v1393
        %v1396 = vmul.f32 %v1395, %v1393
        %v1397 = vmul.f32 %v1396, %v1395
        %v1398 = vmul.f32 0.5, %v1397
        %v1399 = vsub.f32 1.5, %v1398
        %v1400 = vmul.f32 %v1395, %v1399
        %vm1401 = vweird.f32 %v1393
        %vm1402 = vweird.f32 %v1395
        %vm1403 = vmor %vm1401, %vm1402
        %v1404 = vsel %vm1403, %v1395, %v1400
        %v1405 = vrsqrt.pop %v1394
        %v1406 = vmul.f32 %v1405, %v1394
        %v1407 = vmul.f32 %v1406, %v1405
        %v1408 = vmul.f32 0.5, %v1407
        %v1409 = vsub.f32 1.5, %v1408
        %v1410 = vmul.f32 %v1405, %v1409
        %vm1411 = vweird.f32 %v1394
        %vm1412 = vweird.f32 %v1405
        %vm1413 = vmor %vm1411, %vm1412
        %v1414 = vsel %vm1413, %v1405, %v1410
        %v1415 = vmul.f32 %v1381, %v1404
        %v1416 = vmul.f32 %v1382, %v1414
        %v1418 = vperm.slane %v1364, 0
        %v1420 = vmul.f32 %v1415, %v1418
        %v1421 = vmul.f32 %v1416, %v1418
        %v1423 = vperm.slane %v1365, 0
        %v1425 = vadd.f32 %v1420, %v1423
        %v1426 = vadd.f32 %v1421, %v1423
        %v1428 = vsel %vm1083, %v1366, 0
        %1430 = vmatpush.msra.mxu0 0.0
        %1431 = vmatpush.msra.mxu0 0.0
        %1432 = vmatpush.msra.mxu0 0.0
        %1433 = vmatpush.msra.mxu0 0.0
        %1434 = vmatpush.msra.mxu0 0.0
        %1435 = vmatpush.msra.mxu0 0.0
        %1436 = vmatpush.msra.mxu0 0.0
        %1437 = vmatpush.msra.mxu0 0.0
        %1438 = vmatpush.msra.mxu0 0.0
        %1439 = vmatpush.msra.mxu0 0.0
        %1440 = vmatpush.msra.mxu0 0.0
        %1441 = vmatpush.msra.mxu0 0.0
        %1442 = vmatpush.msra.mxu0 0.0
        %1443 = vmatpush.msra.mxu0 0.0
        %1444 = vmatpush.msra.mxu0 %v1426
        %1445 = vmatpush.msra.mxu0 %v1425
        %1446 = vmatmul.f32.gmra.mxu0 %v1428
        %v1447 = vpop.f32.mrf.mxu0
        %v1448 = vadd.f32 0.0, %v1447
        %1449 = vdwg.mxu0
        %v1451 = vsel %vm1083, %v1367, 0
        %1453 = vmatpush.msra.mxu0 0.0
        %1454 = vmatpush.msra.mxu0 0.0
        %1455 = vmatpush.msra.mxu0 0.0
        %1456 = vmatpush.msra.mxu0 0.0
        %1457 = vmatpush.msra.mxu0 0.0
        %1458 = vmatpush.msra.mxu0 0.0
        %1459 = vmatpush.msra.mxu0 0.0
        %1460 = vmatpush.msra.mxu0 0.0
        %1461 = vmatpush.msra.mxu0 0.0
        %1462 = vmatpush.msra.mxu0 0.0
        %1463 = vmatpush.msra.mxu0 0.0
        %1464 = vmatpush.msra.mxu0 0.0
        %1465 = vmatpush.msra.mxu0 0.0
        %1466 = vmatpush.msra.mxu0 0.0
        %1467 = vmatpush.msra.mxu0 %v1426
        %1468 = vmatpush.msra.mxu0 %v1425
        %1469 = vmatmul.f32.gmra.mxu0 %v1451
        %v1470 = vpop.f32.mrf.mxu0
        %v1471 = vadd.f32 0.0, %v1470
        %1472 = vdwg.mxu0
        %v1474 = vsel %vm1083, %v1471, 0
        %1476 = vmatpush.msra.mxu0 0.0
        %1477 = vmatpush.msra.mxu0 0.0
        %1478 = vmatpush.msra.mxu0 0.0
        %1479 = vmatpush.msra.mxu0 0.0
        %1480 = vmatpush.msra.mxu0 0.0
        %1481 = vmatpush.msra.mxu0 0.0
        %1482 = vmatpush.msra.mxu0 0.0
        %1483 = vmatpush.msra.mxu0 0.0
        %1484 = vmatpush.msra.mxu0 0.0
        %1485 = vmatpush.msra.mxu0 0.0
        %1486 = vmatpush.msra.mxu0 0.0
        %1487 = vmatpush.msra.mxu0 0.0
        %1488 = vmatpush.msra.mxu0 0.0
        %1489 = vmatpush.msra.mxu0 0.0
        %1490 = vmatpush.msra.mxu0 %v1371
        %1491 = vmatpush.msra.mxu0 %v1370
        %1492 = vmatmul.f32.gmra.mxu0 %v1474
        %v1493 = vpop.f32.mrf.mxu0
        %v1494 = vadd.f32 0.0, %v1493
        %1495 = vdwg.mxu0
        %v1497 = vsel %vm1083, %v1448, 0
        %1499 = vmatpush.msra.mxu0 0.0
        %1500 = vmatpush.msra.mxu0 0.0
        %1501 = vmatpush.msra.mxu0 0.0
        %1502 = vmatpush.msra.mxu0 0.0
        %1503 = vmatpush.msra.mxu0 0.0
        %1504 = vmatpush.msra.mxu0 0.0
        %1505 = vmatpush.msra.mxu0 0.0
        %1506 = vmatpush.msra.mxu0 0.0
        %1507 = vmatpush.msra.mxu0 0.0
        %1508 = vmatpush.msra.mxu0 0.0
        %1509 = vmatpush.msra.mxu0 0.0
        %1510 = vmatpush.msra.mxu0 0.0
        %1511 = vmatpush.msra.mxu0 0.0
        %1512 = vmatpush.msra.mxu0 0.0
        %1513 = vmatpush.msra.mxu0 %v1369
        %1514 = vmatpush.msra.mxu0 %v1368
        %1515 = vmatmul.f32.gmra.mxu0 %v1497
        %v1516 = vpop.f32.mrf.mxu0
        %v1517 = vadd.f32 %v1494, %v1516
        %1518 = vdwg.mxu0
        %v1520 = vperm.slane %v1372, 0
        %v1522 = vadd.f32 %v1517, %v1520
        %v1523 = vld [vmem:[%s43] sm:$0x7f]
        %v1524 = vld [vmem:[%s45] sm:$0x1]
        %v1525 = vld [vmem:[%s47] sm:$0x1]
        %v1526 = vld [vmem:[%s49] sm:$0x1]
        %v1527 = vld [vmem:[%s51] sm:$0xff]
        %v1528 = vld [vmem:[%s51 + $0x8] sm:$0xff]
        %v1529 = vld [vmem:[%s51 + $0x10] sm:$0xff]
        %v1530 = vld [vmem:[%s51 + $0x18] sm:$0xff]
        %v1531 = vld [vmem:[%s53] sm:$0x1]
        %v1532 = vld [vmem:[%s55] sm:$0xff]
        %v1533 = vld [vmem:[%s55 + $0x8] sm:$0xff]
        %v1534 = vld [vmem:[%s55 + $0x10] sm:$0xff]
        %v1535 = vld [vmem:[%s55 + $0x18] sm:$0xff]
        %v1536 = vld [vmem:[%s55 + $0x20] sm:$0xff]
        %v1537 = vld [vmem:[%s55 + $0x28] sm:$0xff]
        %v1538 = vld [vmem:[%s55 + $0x30] sm:$0xff]
        %v1539 = vld [vmem:[%s55 + $0x38] sm:$0xff]
        %v1540 = vld [vmem:[%s55 + $0x40] sm:$0xff]
        %v1541 = vld [vmem:[%s55 + $0x48] sm:$0xff]
        %v1542 = vld [vmem:[%s55 + $0x50] sm:$0xff]
        %v1543 = vld [vmem:[%s55 + $0x58] sm:$0xff]
        %v1544 = vld [vmem:[%s55 + $0x60] sm:$0xff]
        %v1545 = vld [vmem:[%s55 + $0x68] sm:$0xff]
        %v1546 = vld [vmem:[%s55 + $0x70] sm:$0xff]
        %v1547 = vld [vmem:[%s55 + $0x78] sm:$0xff]
        %v1548 = vld [vmem:[%s57] sm:$0x1]
        %v1549 = vld [vmem:[%s59] sm:$0x1]
        %vm1550 = vcmask 261120
        %1551 = vst.msk [vmem:[#allocation3] sm:$0xff] %vm1550, 0.0
        %vm1552 = vcmask 259072
        %1553 = vst.msk [vmem:[#allocation3 + $0x8] sm:$0x3f] %vm1552, 0.0
        %1554 = vst.msk [vmem:[#allocation3 + $0x3] sm:$0xff] %vm1550, %v1522
        %v1555 = vld [vmem:[#allocation3] sm:$0xff]
        %v1556 = vperm.slane %v1523, 0
        %v1557 = vmul.f32 %v1555, %v1556
        %v1558 = vld [vmem:[#allocation3 + $0x1] sm:$0xff]
        %v1559 = vperm.slane %v1523, 1
        %v1560 = vmul.f32 %v1558, %v1559
        %v1561 = vadd.f32 %v1557, %v1560
        %v1562 = vld [vmem:[#allocation3 + $0x2] sm:$0xff]
        %v1563 = vperm.slane %v1523, 2
        %v1564 = vmul.f32 %v1562, %v1563
        %v1565 = vadd.f32 %v1561, %v1564
        %v1566 = vld [vmem:[#allocation3 + $0x3] sm:$0xff]
        %v1567 = vperm.slane %v1523, 3
        %v1568 = vmul.f32 %v1566, %v1567
        %v1569 = vadd.f32 %v1565, %v1568
        %v1570 = vld [vmem:[#allocation3 + $0x4] sm:$0xff]
        %v1571 = vperm.slane %v1523, 4
        %v1572 = vmul.f32 %v1570, %v1571
        %v1573 = vadd.f32 %v1569, %v1572
        %v1574 = vld [vmem:[#allocation3 + $0x5] sm:$0xff]
        %v1575 = vperm.slane %v1523, 5
        %v1576 = vmul.f32 %v1574, %v1575
        %v1577 = vadd.f32 %v1573, %v1576
        %v1578 = vld [vmem:[#allocation3 + $0x6] sm:$0xff]
        %v1579 = vperm.slane %v1523, 6
        %v1580 = vmul.f32 %v1578, %v1579
        %v1581 = vadd.f32 %v1577, %v1580
        %v1583 = vperm.slane %v1524, 0
        %v1585 = vadd.f32 %v1581, %v1583
        %v1586 = vsel %vm1550, %v1585, 0.0
        %1587 = vadd.xlane.f32.xlu0 %v1586
        %v1588 = vpop.xlane.xlu0 %1587
        %v1589 = vrcp.pop 32.0
        %v1590 = vmul.f32 32.0, %v1589
        %v1591 = vsub.f32 1.0, %v1590
        %v1592 = vmul.f32 %v1589, %v1591
        %v1593 = vadd.f32 %v1589, %v1592
        %vm1594 = vweird.f32 %v1589
        %v1595 = vsel %vm1594, %v1589, %v1593
        %v1596 = vmul.f32 %v1588, %v1595
        %v1597 = vsub.f32 %v1585, %v1596
        %v1598 = vmul.f32 %v1597, %v1597
        %v1599 = vsel %vm1550, %v1598, 0.0
        %1600 = vadd.xlane.f32.xlu0 %v1599
        %v1601 = vpop.xlane.xlu0 %1600
        %v1602 = vmul.f32 %v1601, %v1595
        %v1603 = vadd.f32 %v1602, 1e-06
        %v1604 = vrsqrt.pop %v1603
        %v1605 = vmul.f32 %v1604, %v1603
        %v1606 = vmul.f32 %v1605, %v1604
        %v1607 = vmul.f32 0.5, %v1606
        %v1608 = vsub.f32 1.5, %v1607
        %v1609 = vmul.f32 %v1604, %v1608
        %vm1610 = vweird.f32 %v1603
        %vm1611 = vweird.f32 %v1604
        %vm1612 = vmor %vm1610, %vm1611
        %v1613 = vsel %vm1612, %v1604, %v1609
        %v1614 = vmul.f32 %v1597, %v1613
        %v1616 = vperm.slane %v1525, 0
        %v1618 = vmul.f32 %v1614, %v1616
        %v1620 = vperm.slane %v1526, 0
        %v1622 = vadd.f32 %v1618, %v1620
        %v1624 = vperm.slane %v1531, 0
        %v1627 = vsel %vm1550, %v1622, 0
        %1629 = vmatpush.msra.mxu0 0.0
        %1630 = vmatpush.msra.mxu0 0.0
        %1631 = vmatpush.msra.mxu0 0.0
        %1632 = vmatpush.msra.mxu0 0.0
        %1633 = vmatpush.msra.mxu0 0.0
        %1634 = vmatpush.msra.mxu0 0.0
        %1635 = vmatpush.msra.mxu0 0.0
        %1636 = vmatpush.msra.mxu0 0.0
        %1637 = vmatpush.msra.mxu0 0.0
        %1638 = vmatpush.msra.mxu0 0.0
        %1639 = vmatpush.msra.mxu0 0.0
        %1640 = vmatpush.msra.mxu0 0.0
        %1641 = vmatpush.msra.mxu0 %v1530
        %1642 = vmatpush.msra.mxu0 %v1529
        %1643 = vmatpush.msra.mxu0 %v1528
        %1644 = vmatpush.msra.mxu0 %v1527
        %1645 = vmatmul.f32.gmra.mxu0 %v1627
        %v1646 = vpop.f32.mrf.mxu0
        %v1647 = vadd.f32 %v1624, %v1646
        %1648 = vdwg.mxu0
        %v1649 = vmul.f32 %v1647, %v1647
        %v1650 = vmul.f32 %v1647, %v1649
        %v1651 = vmul.f32 %v1650, 0.044715
        %v1652 = vadd.f32 %v1647, %v1651
        %v1653 = vmul.f32 %v1652, 0.7978846
        %v1654 = vtanh.pop %v1653
        %v1655 = vadd.f32 %v1654, 1.0
        %v1656 = vmul.f32 %v1655, 0.5
        %v1657 = vmul.f32 %v1647, %v1656
        %v1659 = vperm.slane %v1548, 0
        %1661 = vmatpush.msra.mxu0 %v1547
        %1662 = vmatpush.msra.mxu0 %v1546
        %1663 = vmatpush.msra.mxu0 %v1545
        %1664 = vmatpush.msra.mxu0 %v1544
        %1665 = vmatpush.msra.mxu0 %v1543
        %1666 = vmatpush.msra.mxu0 %v1542
        %1667 = vmatpush.msra.mxu0 %v1541
        %1668 = vmatpush.msra.mxu0 %v1540
        %1669 = vmatpush.msra.mxu0 %v1539
        %1670 = vmatpush.msra.mxu0 %v1538
        %1671 = vmatpush.msra.mxu0 %v1537
        %1672 = vmatpush.msra.mxu0 %v1536
        %1673 = vmatpush.msra.mxu0 %v1535
        %1674 = vmatpush.msra.mxu0 %v1534
        %1675 = vmatpush.msra.mxu0 %v1533
        %1676 = vmatpush.msra.mxu0 %v1532
        %1677 = vmatmul.f32.gmra.mxu0 %v1657
        %v1678 = vpop.f32.mrf.mxu0
        %v1679 = vadd.f32 %v1659, %v1678
        %1680 = vdwg.mxu0
        %v1682 = vperm.slane %v1549, 0
        %v1684 = vmul.f32 %v1679, %v1682
        %v1685 = vadd.f32 %v1522, %v1684
        %v1686 = vld [vmem:[%s61] sm:$0x1]
        %v1687 = vld [vmem:[%s63] sm:$0x1]
        %v1688 = vld [vmem:[%s65] sm:$0xff]
        %v1689 = vld [vmem:[%s65 + $0x8] sm:$0xff]
        %v1690 = vld [vmem:[%s65 + $0x10] sm:$0xff]
        %v1691 = vld [vmem:[%s65 + $0x18] sm:$0xff]
        %v1692 = vld [vmem:[%s67] sm:$0x1]
        %v1693 = vsel %vm1550, %v1685, 0.0
        %v1694 = vrot.slane %v1693, 4
        %v1695 = vadd.f32 %v1693, %v1694
        %v1696 = vrot.slane %v1695, 2
        %v1697 = vadd.f32 %v1695, %v1696
        %v1698 = vrot.slane %v1697, 1
        %v1699 = vadd.f32 %v1697, %v1698
        %v1700 = vrcp.pop 8.0
        %v1701 = vmul.f32 8.0, %v1700
        %v1702 = vsub.f32 1.0, %v1701
        %v1703 = vmul.f32 %v1700, %v1702
        %v1704 = vadd.f32 %v1700, %v1703
        %vm1705 = vweird.f32 %v1700
        %v1706 = vsel %vm1705, %v1700, %v1704
        %v1707 = vmul.f32 %v1699, %v1706
        %v1708 = vsel %vm1550, %v1707, 0.0
        %1709 = vadd.xlane.f32.xlu0 %v1708
        %v1710 = vpop.xlane.xlu0 %1709
        %v1711 = vmul.f32 %v1710, %v1595
        %v1712 = vsub.f32 %v1707, %v1711
        %v1713 = vmul.f32 %v1712, %v1712
        %v1714 = vsel %vm1550, %v1713, 0.0
        %1715 = vadd.xlane.f32.xlu0 %v1714
        %v1716 = vpop.xlane.xlu0 %1715
        %v1717 = vmul.f32 %v1716, %v1595
        %v1718 = vadd.f32 %v1717, 1e-06
        %v1719 = vrsqrt.pop %v1718
        %v1720 = vmul.f32 %v1719, %v1718
        %v1721 = vmul.f32 %v1720, %v1719
        %v1722 = vmul.f32 0.5, %v1721
        %v1723 = vsub.f32 1.5, %v1722
        %v1724 = vmul.f32 %v1719, %v1723
        %vm1725 = vweird.f32 %v1718
        %vm1726 = vweird.f32 %v1719
        %vm1727 = vmor %vm1725, %vm1726
        %v1728 = vsel %vm1727, %v1719, %v1724
        %v1729 = vmul.f32 %v1712, %v1728
        %v1730 = vmul.f32 %v1729, %v1686
        %v1731 = vadd.f32 %v1730, %v1687
        %v1733 = vsel %vm1550, %v1731, 0
        %1735 = vmatpush.msra.mxu0 0.0
        %1736 = vmatpush.msra.mxu0 0.0
        %1737 = vmatpush.msra.mxu0 0.0
        %1738 = vmatpush.msra.mxu0 0.0
        %1739 = vmatpush.msra.mxu0 0.0
        %1740 = vmatpush.msra.mxu0 0.0
        %1741 = vmatpush.msra.mxu0 0.0
        %1742 = vmatpush.msra.mxu0 0.0
        %1743 = vmatpush.msra.mxu0 0.0
        %1744 = vmatpush.msra.mxu0 0.0
        %1745 = vmatpush.msra.mxu0 0.0
        %1746 = vmatpush.msra.mxu0 0.0
        %1747 = vmatpush.msra.mxu0 %v1691
        %1748 = vmatpush.msra.mxu0 %v1690
        %1749 = vmatpush.msra.mxu0 %v1689
        %1750 = vmatpush.msra.mxu0 %v1688
        %1751 = vmatmul.f32.gmra.mxu0 %v1733
        %v1752 = vpop.f32.mrf.mxu0
        %v1753 = vadd.f32 %v1692, %v1752
        %1754 = vdwg.mxu0
        %vm1755 = vcmask 73728
        %1756 = vst.msk [vmem:[%s1034] sm:$0x1] %vm1755, %v1753
        %s1757 = sand.u32 %s810, 1
        %s1758 = scalar_lea.sflag [#allocation5], %s1757
        %s1759 = sand.u32 %s810, 1
        %s1760 = scalar_lea.vmem [#allocation4], %s1759
        // Predicated region
        $region157: #{tpu_custom_call.1} parent=155 // pred_check
          %p1761 = pneg %p820
        $region158: #{tpu_custom_call.1} parent=155 // pred_check_branch
          %1763 = sbr.rel (%p1761) target = $region160
        $region159: #{tpu_custom_call.1} parent=155 // pred_region
          %1765 = vsyncadd %s1758, 0
          %s1766 = scalar_lea.hbm %s69, %s83
          %s1768 = sshll.u32 %s1760, 4
          %s1769 = int_to_ptr.vmem [resolvable:$true] %s1768
          %s1770 = sshll.u32 %s1766, 4
          %s1771 = int_to_ptr.hbm [resolvable:$true] %s1770
          %1773 = dma.vmem_to_hbm [thread:$0]  %s1769, 16, %s1771, %s1758
        $region160: #{tpu_custom_call.1} parent=155 // pred_fallthru
          _
      $region156: #{tpu_custom_call.1} parent=5 // pred_fallthru
        _
      %p1774 = scmp.le.s32.totalorder 2, %s78
      // Predicated region
      $region161: #{tpu_custom_call.1} parent=5 // pred_check
        %p1775 = pneg %p1774
      $region162: #{tpu_custom_call.1} parent=5 // pred_check_branch
        %1777 = sbr.rel (%p1775) target = $region164
      $region163: #{tpu_custom_call.1} parent=5 // pred_region
        %s1778 = ssub.s32 %s78, 2
        // Predicated region
        $region165: #{tpu_custom_call.1} parent=163 // pred_check
          %p1779 = pneg %p826
        $region166: #{tpu_custom_call.1} parent=163 // pred_check_branch
          %1781 = sbr.rel (%p1779) target = $region168
        $region167: #{tpu_custom_call.1} parent=163 // pred_region
          %s1782 = sand.u32 %s811, 1
          %s1783 = scalar_lea.sflag [#allocation5], %s1782
          %s1784 = sand.u32 %s811, 1
          %s1785 = scalar_lea.vmem [#allocation4], %s1784
          %1787 = dma.done %s1783, 16
        $region168: #{tpu_custom_call.1} parent=163 // pred_fallthru
          _
      $region164: #{tpu_custom_call.1} parent=5 // pred_fallthru
        _
    $region6: #{tpu_custom_call.1} parent=1 // loop_footer
      %s82 = sadd.s32 1, %s78
    $region7: #{tpu_custom_call.1} parent=1 // loop_footer_branch
      %77 = sbr.rel target = $region3
    $region8: #{tpu_custom_call.1} parent=1 // loop_exit
      _
    %1788 = vsyncpa [#allocation5], 1
    %s1789 = scalar_lea.sflag [#allocation5], 1
    %1790 = vsyncpa %s1789, 1

</llo_original>
